<compile_context>
chip_gen: v7x
topology: tpu7x:2x2x1
jax: 0.10.0
libtpu: 0.0.40
codegen_flags: <defaults>
</compile_context>

<pallas_src>
import functools
import math

import jax
import jax.numpy as jnp
from jax.experimental import pallas as pl
from jax.experimental.pallas import tpu as pltpu


def _round_up(x, m):
    return ((x + m - 1) // m) * m


def _pad2d(x, rows, cols):
    r, c = x.shape
    if r == rows and c == cols:
        return x
    return jnp.pad(x, ((0, rows - r), (0, cols - c)))


def _vmem_budget_and_limit():
    """Generation-aware VMEM sizing: 128 MiB/core on v5e/v6e, 64 MiB/TC on v7x."""
    cap = 64 * 1024 * 1024
    try:
        cap = int(getattr(pltpu.get_tpu_info(), "vmem_capacity_bytes", cap))
    except Exception:
        pass
    if cap >= 100 * 1024 * 1024:                       # v5e / v6e (128 MiB)
        return 88 * 1024 * 1024, 112 * 1024 * 1024
    return 28 * 1024 * 1024, 44 * 1024 * 1024          # v7x (64 MiB / TC)


# -----------------------------------------------------------------------------
# Pass 1: projection.  One row tile of nodes per grid step; W / a2 resident.
# -----------------------------------------------------------------------------
def _proj_kernel(h_ref, w_ref, a2_ref, wh_ref, wh2_ref):
    # Wh tile = h_tile @ W   (bf16 operands already in VMEM, f32 acc on the MXU)
    wh = jnp.dot(h_ref[...], w_ref[...], preferred_element_type=jnp.float32)
    # Wh2 row = a[F:] . Wh  -> (1, tile): contract over F, no (N,1)->(1,N) relayout.
    wh2_ref[...] = jax.lax.dot_general(
        a2_ref[...], wh,
        dimension_numbers=(((1,), (1,)), ((), ())),
        preferred_element_type=jnp.float32,
    )
    # Keep Wh in bf16: halves its resident footprint in pass 2; the aggregation
    # matmul runs in bf16 anyway.
    wh_ref[...] = wh.astype(wh_ref.dtype)


# -----------------------------------------------------------------------------
# Pass 2: fused mask + softmax + aggregation.  One (TQ, N) row tile per step.
# -----------------------------------------------------------------------------
def _attn_kernel(alpha, tile, adj_ref, a1_ref, wh2_ref, neg_ref, wh_ref,
                 out_ref, *attn_out):
    i = pl.program_id(0)
    start = pl.multiple_of(i * tile, 128)

    # Wh1 for this row tile, recomputed from the resident bf16 Wh (removes the
    # lane-width-1 Wh1 output / masked store of v1).
    wh_tile = wh_ref[pl.ds(start, tile), :].astype(jnp.float32)
    wh1 = jnp.sum(wh_tile * a1_ref[...], axis=1, keepdims=True)        # (tile, 1)

    # e[i, j] = leakyrelu(Wh1[i] + Wh2[j]);  leakyrelu(x) = max(x, alpha*x).
    e = wh1 + wh2_ref[...]                                             # (tile, N)
    leaky = jnp.maximum(e, alpha * e)
    # adj is an int8 {0,1} mask: widen then compare (exact, convert is hidden
    # under the HBM-bound adj stream).
    edge = adj_ref[...].astype(jnp.float32) > 0.0
    masked = jnp.where(edge, leaky, neg_ref[...])

    m = jnp.max(masked, axis=1, keepdims=True)
    ex = jnp.exp(masked - m)
    denom = jnp.sum(ex, axis=1, keepdims=True)
    attention = ex * pl.reciprocal(denom, approx=True)                 # EUP divide
    # TODO(synk): F.dropout(attention, p, training=True) skipped — eval
    # (training=False) semantics.
    # TODO(synk): on v6e/v7x the elementwise chain above could run in bf16
    # (keeping max/sum/reciprocal in f32) for ~2x VALU/EUP throughput.

    # h_prime = attention @ Wh (bf16 MXU operands, f32 accumulation), then ELU.
    h_prime = jnp.dot(attention.astype(jnp.bfloat16), wh_ref[...],
                      preferred_element_type=jnp.float32)
    # TODO(synk): switch to expm1 once guaranteed in Mosaic; exp(min(x,0))-1
    # loses a little precision for h_prime near 0.
    elu = jnp.where(h_prime > 0.0, h_prime,
                    jnp.exp(jnp.minimum(h_prime, 0.0)) - 1.0)
    out_ref[...] = elu.astype(out_ref.dtype)
    if attn_out:
        attn_out[0][...] = attention.astype(attn_out[0].dtype)


def _choose_row_tile(n_pad, f_out_pad, desired, budget_bytes, attn_bytes):
    """Largest multiple-of-128 row tile dividing n_pad that fits the budget."""
    tile = max(128, min(_round_up(desired, 128), n_pad))
    while n_pad % tile:
        tile -= 128

    def vmem_estimate(t):
        slab = t * n_pad
        return (
            2 * slab * 1                   # double-buffered int8 adj tiles
            + 2 * slab * attn_bytes        # double-buffered attention out tiles
            + 2 * t * f_out_pad * 4        # double-buffered h_prime out tiles
            + 2 * n_pad * f_out_pad * 2    # resident Wh (bf16, still 2-buffered)
            + 4 * slab * 4                 # e / masked / ex / attention f32 temps
            + slab * 2                     # bf16 attention copy fed to the MXU
            + 8 * n_pad * 4                # Wh2 row, neg row, a1 (with buffers)
        )

    while tile > 128 and vmem_estimate(tile) > budget_bytes:
        tile -= 128
        while n_pad % tile:
            tile -= 128
    # TODO(synk): if even tile=128 exceeds the budget (very large N), fall back
    # to flash-style column tiling instead of shrinking further.
    return tile


def graph_attention_layer(h, W, a, adj, alpha, *, row_tile=512,
                          with_attention=True, attention_dtype=jnp.float32):
    """Pallas implementation of GraphAttentionLayer.forward (concat=True, eval).

    h:   (N, in_features) float32
    W:   (in_features, out_features) float32
    a:   (2*out_features, 1) float32
    adj: (N, N) float32 (entries > 0 mark edges)
    Returns (elu(h_prime), attention) — attention is None if with_attention=False.
    """
    n, f_in = h.shape
    f_out = W.shape[1]

    # Lane dims (and N) padded to multiples of 128 so stores are unmasked and
    # the MXU sees dense operands; f_in only needs to be a sublane multiple
    # because its blocks cover the whole dimension.
    n_pad = _round_up(n, 128)
    f_in_pad = _round_up(f_in, 8)
    f_out_pad = _round_up(f_out, 128)

    # bf16 operands cast once in the wrapper (halves pass-1 HBM reads).
    h_p = _pad2d(h.astype(jnp.bfloat16), n_pad, f_in_pad)
    w_p = _pad2d(W.astype(jnp.bfloat16), f_in_pad, f_out_pad)
    # Adjacency as an int8 {0,1} mask: 4x less DMA than f32; compare is exact.
    adj_p = _pad2d((adj > 0).astype(jnp.int8), n_pad, n_pad)
    a1 = _pad2d(a[:f_out, 0].reshape(1, f_out).astype(jnp.float32), 1, f_out_pad)
    a2 = _pad2d(a[f_out:, 0].reshape(1, f_out).astype(jnp.float32), 1, f_out_pad)
    # "no edge" fill row: -9e15 for real columns (reference semantics), far more
    # negative for padded columns so degree-0 rows softmax over n, not n_pad.
    neg_row = jnp.where(jnp.arange(n_pad) < n,
                        jnp.float32(-9e15), jnp.float32(-3e38)).reshape(1, n_pad)

    budget, vmem_limit = _vmem_budget_and_limit()
    attn_bytes = jnp.dtype(attention_dtype).itemsize if with_attention else 0
    tile = _choose_row_tile(n_pad, f_out_pad, row_tile, budget, attn_bytes)
    grid = (n_pad // tile,)
    cparams = pltpu.CompilerParams(
        dimension_semantics=("parallel",),   # independent row tiles
        vmem_limit_bytes=vmem_limit,
    )

    # ---- pass 1: Wh (bf16) and the Wh2 row, computed exactly once ------------
    wh_bf16, wh2_row = pl.pallas_call(
        _proj_kernel,
        grid=grid,
        in_specs=[
            pl.BlockSpec((tile, f_in_pad), lambda i: (i, 0)),
            pl.BlockSpec((f_in_pad, f_out_pad), lambda i: (0, 0)),   # W resident
            pl.BlockSpec((1, f_out_pad), lambda i: (0, 0)),          # a2 resident
        ],
        out_specs=(
            pl.BlockSpec((tile, f_out_pad), lambda i: (i, 0)),
            pl.BlockSpec((1, tile), lambda i: (0, i)),
        ),
        out_shape=(
            jax.ShapeDtypeStruct((n_pad, f_out_pad), jnp.bfloat16),
            jax.ShapeDtypeStruct((1, n_pad), jnp.float32),
        ),
        compiler_params=cparams,
        cost_estimate=pl.CostEstimate(
            flops=2 * n_pad * f_in_pad * f_out_pad + 2 * n_pad * f_out_pad,
            transcendentals=0,
            bytes_accessed=2 * (n_pad * f_in_pad + f_in_pad * f_out_pad
                                + n_pad * f_out_pad) + 4 * n_pad,
        ),
    )(h_p, w_p, a2)

    # ---- pass 2: fused mask + softmax + aggregation, row-tiled ----------------
    if with_attention:
        out_specs = (pl.BlockSpec((tile, f_out_pad), lambda i: (i, 0)),
                     pl.BlockSpec((tile, n_pad), lambda i: (i, 0)))
        out_shape = (jax.ShapeDtypeStruct((n_pad, f_out_pad), jnp.float32),
                     jax.ShapeDtypeStruct((n_pad, n_pad), attention_dtype))
    else:
        out_specs = pl.BlockSpec((tile, f_out_pad), lambda i: (i, 0))
        out_shape = jax.ShapeDtypeStruct((n_pad, f_out_pad), jnp.float32)

    result = pl.pallas_call(
        functools.partial(_attn_kernel, float(alpha), tile),
        grid=grid,
        in_specs=[
            pl.BlockSpec((tile, n_pad), lambda i: (i, 0)),          # adj tile (int8)
            pl.BlockSpec((1, f_out_pad), lambda i: (0, 0)),         # a1 resident
            pl.BlockSpec((1, n_pad), lambda i: (0, 0)),             # Wh2 row resident
            pl.BlockSpec((1, n_pad), lambda i: (0, 0)),             # neg fill resident
            pl.BlockSpec((n_pad, f_out_pad), lambda i: (0, 0)),     # Wh (bf16) resident
        ],
        out_specs=out_specs,
        out_shape=out_shape,
        compiler_params=cparams,
        cost_estimate=pl.CostEstimate(
            flops=(2 * n_pad * n_pad * f_out_pad + 10 * n_pad * n_pad
                   + 2 * n_pad * f_out_pad),
            transcendentals=n_pad * n_pad + n_pad * f_out_pad + n_pad,
            bytes_accessed=(n_pad * n_pad * (1 + attn_bytes)
                            + 6 * n_pad * f_out_pad + 16 * n_pad),
        ),
    )(adj_p, a1, wh2_row, neg_row, wh_bf16)

    if with_attention:
        h_prime_p, attention_p = result
        return h_prime_p[:n, :f_out], attention_p[:n, :n]
    return result[:n, :f_out], None


def _xavier_uniform(key, shape, gain):
    fan_in, fan_out = shape[0], shape[1]
    bound = gain * math.sqrt(6.0 / (fan_in + fan_out))
    return jax.random.uniform(key, shape, jnp.float32, minval=-bound, maxval=bound)


def _reference(h, W, a, adj, alpha):
    """Pure-JAX f32 reference matching the PyTorch forward."""
    f_out = W.shape[1]
    wh = h @ W
    wh1 = wh @ a[:f_out, :]
    wh2 = wh @ a[f_out:, :]
    e = wh1 + wh2.T
    e = jnp.where(e > 0, e, alpha * e)
    att = jnp.where(adj > 0, e, -9e15)
    att = jax.nn.softmax(att, axis=1)
    h_prime = att @ wh
    return jnp.where(h_prime > 0, h_prime, jnp.expm1(h_prime)), att


if __name__ == "__main__":
    # Small synthetic problem consistent with the module's forward; N=200 forces
    # padding to 256 and (with row_tile=128) a 2-step grid, exercising tiling.
    N = 200
    in_features = 32
    out_features = 32
    alpha = 0.2          # LeakyReLU negative slope
    gain = 1.414

    key = jax.random.PRNGKey(0)
    k_h, k_w, k_a, k_adj = jax.random.split(key, 4)

    h = jax.random.normal(k_h, (N, in_features), dtype=jnp.float32)
    W = _xavier_uniform(k_w, (in_features, out_features), gain)
    a = _xavier_uniform(k_a, (2 * out_features, 1), gain)

    # deterministic adjacency: random edges + self loops
    adj = (jax.random.uniform(k_adj, (N, N)) > 0.5).astype(jnp.float32)
    adj = jnp.maximum(adj, jnp.eye(N, dtype=jnp.float32))

    gat = jax.jit(functools.partial(graph_attention_layer, alpha=alpha, row_tile=128))
    h_prime, attention = gat(h, W, a, adj)
    jax.block_until_ready((h_prime, attention))

    # sanity checks (loose tolerances: matmuls run in bf16 and the softmax
    # divide uses the approximate EUP reciprocal; softmax itself is f32)
    ref_hp, ref_att = _reference(h, W, a, adj, alpha)
    assert h_prime.shape == (N, out_features)
    assert attention.shape == (N, N)
    assert bool(jnp.all(jnp.isfinite(h_prime)))
    assert bool(jnp.all(jnp.isfinite(attention)))
    row_sums = jnp.sum(attention, axis=1)
    assert bool(jnp.all(jnp.abs(row_sums - 1.0) < 2e-2))
    assert float(jnp.max(jnp.abs(attention - ref_att))) < 0.15
    assert float(jnp.max(jnp.abs(h_prime - ref_hp))) < 0.6

    print("KERNEL_OK")
</pallas_src>

<mosaic_0001>
module attributes {stable_mosaic.version = 11 : i64} {
  func.func @_proj_kernel(%arg0: i32, %arg1: memref<128x32xbf16, #tpu.memory_space<vmem>>, %arg2: memref<32x128xbf16, #tpu.memory_space<vmem>>, %arg3: memref<1x128xf32, #tpu.memory_space<vmem>>, %arg4: memref<128x128xbf16, #tpu.memory_space<vmem>>, %arg5: memref<1x128xf32, #tpu.memory_space<vmem>>) attributes {dimension_semantics = [#tpu.dimension_semantics<parallel>], iteration_bounds = array<i64: 2>, scalar_prefetch = 0 : i64, scratch_operands = 0 : i64, tpu.core_type = #tpu.core_type<tc>, window_params = [{transform_indices = @transform_0, window_bounds = array<i64: 128, 32>}, {pipeline_mode = #tpu.pipeline_mode<synchronous>, transform_indices = @transform_1, window_bounds = array<i64: 32, 128>}, {pipeline_mode = #tpu.pipeline_mode<synchronous>, transform_indices = @transform_2, window_bounds = array<i64: 1, 128>}, {transform_indices = @transform_3, window_bounds = array<i64: 128, 128>}, {transform_indices = @transform_4, window_bounds = array<i64: 1, 128>}]} {
    %c0 = arith.constant 0 : index
    %c0_0 = arith.constant 0 : index
    %0 = vector.load %arg1[%c0, %c0_0] : memref<128x32xbf16, #tpu.memory_space<vmem>>, vector<128x32xbf16>
    %c0_1 = arith.constant 0 : index
    %c0_2 = arith.constant 0 : index
    %1 = vector.load %arg2[%c0_1, %c0_2] : memref<32x128xbf16, #tpu.memory_space<vmem>>, vector<32x128xbf16>
    %cst = arith.constant dense<0.000000e+00> : vector<128x128xf32>
    %2 = tpu.matmul %0, %1, %cst {dimension_numbers = #tpu.dot_dimension_numbers<[1], [0], [0], [1], [0, 0, 1, 1], [], []>} : vector<128x32xbf16>, vector<32x128xbf16>, vector<128x128xf32> -> vector<128x128xf32>
    %c0_3 = arith.constant 0 : index
    %c0_4 = arith.constant 0 : index
    %3 = vector.load %arg3[%c0_3, %c0_4] : memref<1x128xf32, #tpu.memory_space<vmem>>, vector<1x128xf32>
    %cst_5 = arith.constant dense<0.000000e+00> : vector<1x128xf32>
    %4 = tpu.matmul %3, %2, %cst_5 {dimension_numbers = #tpu.dot_dimension_numbers<[1], [1], [0], [0], [0, 0, 1, 0], [], []>} : vector<1x128xf32>, vector<128x128xf32>, vector<1x128xf32> -> vector<1x128xf32>
    %c0_6 = arith.constant 0 : index
    %c0_7 = arith.constant 0 : index
    %5 = vector.load %arg5[%c0_6, %c0_7] : memref<1x128xf32, #tpu.memory_space<vmem>>, vector<1x128xf32>
    tpu.vector_store %arg5[%c0_6, %c0_7], %4 {strides = array<i32>} : memref<1x128xf32, #tpu.memory_space<vmem>>, vector<1x128xf32>,
    %6 = arith.truncf %2 : vector<128x128xf32> to vector<128x128xbf16>
    %c0_8 = arith.constant 0 : index
    %c0_9 = arith.constant 0 : index
    %7 = vector.load %arg4[%c0_8, %c0_9] : memref<128x128xbf16, #tpu.memory_space<vmem>>, vector<128x128xbf16>
    tpu.vector_store %arg4[%c0_8, %c0_9], %6 {strides = array<i32>} : memref<128x128xbf16, #tpu.memory_space<vmem>>, vector<128x128xbf16>,
    return
  }
  func.func @transform_0(%arg0: i32) -> (i32, i32) {
    %c0_i32 = arith.constant 0 : i32
    %c0_i32_0 = arith.constant 0 : i32
    return %arg0, %c0_i32 : i32, i32
  }
  func.func @transform_1(%arg0: i32) -> (i32, i32) {
    %c0_i32 = arith.constant 0 : i32
    %c0_i32_0 = arith.constant 0 : i32
    %c0_i32_1 = arith.constant 0 : i32
    return %c0_i32, %c0_i32_0 : i32, i32
  }
  func.func @transform_2(%arg0: i32) -> (i32, i32) {
    %c0_i32 = arith.constant 0 : i32
    %c0_i32_0 = arith.constant 0 : i32
    %c0_i32_1 = arith.constant 0 : i32
    return %c0_i32, %c0_i32_0 : i32, i32
  }
  func.func @transform_3(%arg0: i32) -> (i32, i32) {
    %c0_i32 = arith.constant 0 : i32
    %c0_i32_0 = arith.constant 0 : i32
    return %arg0, %c0_i32 : i32, i32
  }
  func.func @transform_4(%arg0: i32) -> (i32, i32) {
    %c0_i32 = arith.constant 0 : i32
    %c0_i32_0 = arith.constant 0 : i32
    return %c0_i32, %arg0 : i32, i32
  }
}

module attributes {stable_mosaic.version = 11 : i64} {
  func.func @_attn_kernel(%arg0: i32, %arg1: memref<128x256xi8, #tpu.memory_space<vmem>>, %arg2: memref<1x128xf32, #tpu.memory_space<vmem>>, %arg3: memref<1x256xf32, #tpu.memory_space<vmem>>, %arg4: memref<1x256xf32, #tpu.memory_space<vmem>>, %arg5: memref<256x128xbf16, #tpu.memory_space<vmem>>, %arg6: memref<128x128xf32, #tpu.memory_space<vmem>>, %arg7: memref<128x256xf32, #tpu.memory_space<vmem>>) attributes {dimension_semantics = [#tpu.dimension_semantics<parallel>], iteration_bounds = array<i64: 2>, scalar_prefetch = 0 : i64, scratch_operands = 0 : i64, tpu.core_type = #tpu.core_type<tc>, window_params = [{transform_indices = @transform_0, window_bounds = array<i64: 128, 256>}, {pipeline_mode = #tpu.pipeline_mode<synchronous>, transform_indices = @transform_1, window_bounds = array<i64: 1, 128>}, {pipeline_mode = #tpu.pipeline_mode<synchronous>, transform_indices = @transform_2, window_bounds = array<i64: 1, 256>}, {pipeline_mode = #tpu.pipeline_mode<synchronous>, transform_indices = @transform_3, window_bounds = array<i64: 1, 256>}, {pipeline_mode = #tpu.pipeline_mode<synchronous>, transform_indices = @transform_4, window_bounds = array<i64: 256, 128>}, {transform_indices = @transform_5, window_bounds = array<i64: 128, 128>}, {transform_indices = @transform_6, window_bounds = array<i64: 128, 256>}]} {
    %c128_i32 = arith.constant 128 : i32
    %0 = arith.muli %arg0, %c128_i32 : i32
    %1 = tpu.assume_multiple %0, 128 : i32
    %2 = arith.index_cast %1 : i32 to index
    %c0 = arith.constant 0 : index
    %3 = vector.load %arg5[%2, %c0] : memref<256x128xbf16, #tpu.memory_space<vmem>>, vector<128x128xbf16>
    %4 = arith.extf %3 : vector<128x128xbf16> to vector<128x128xf32>
    %c0_0 = arith.constant 0 : index
    %c0_1 = arith.constant 0 : index
    %5 = vector.load %arg2[%c0_0, %c0_1] : memref<1x128xf32, #tpu.memory_space<vmem>>, vector<1x128xf32>
    %6 = vector.broadcast %5 : vector<1x128xf32> to vector<128x128xf32>
    %7 = arith.mulf %4, %6 : vector<128x128xf32>
    %cst = arith.constant dense<0.000000e+00> : vector<128xf32>
    %8 = vector.multi_reduction <add>, %7, %cst [1] : vector<128x128xf32> to vector<128xf32>
    %9 = vector.shape_cast %8 : vector<128xf32> to vector<128x1xf32>
    %c0_2 = arith.constant 0 : index
    %c0_3 = arith.constant 0 : index
    %10 = vector.load %arg3[%c0_2, %c0_3] : memref<1x256xf32, #tpu.memory_space<vmem>>, vector<1x256xf32>
    %11 = vector.broadcast %9 : vector<128x1xf32> to vector<128x256xf32>
    %12 = vector.broadcast %10 : vector<1x256xf32> to vector<128x256xf32>
    %13 = arith.addf %11, %12 : vector<128x256xf32>
    %cst_4 = arith.constant 2.000000e-01 : f32
    %14 = vector.broadcast %cst_4 : f32 to vector<128x256xf32>
    %15 = arith.mulf %14, %13 : vector<128x256xf32>
    %16 = arith.maximumf %13, %15 : vector<128x256xf32>
    %c0_5 = arith.constant 0 : index
    %c0_6 = arith.constant 0 : index
    %17 = vector.load %arg1[%c0_5, %c0_6] : memref<128x256xi8, #tpu.memory_space<vmem>>, vector<128x256xi8>
    %18 = arith.sitofp %17 : vector<128x256xi8> to vector<128x256xf32>
    %cst_7 = arith.constant 0.000000e+00 : f32
    %19 = vector.broadcast %cst_7 : f32 to vector<128x256xf32>
    %20 = arith.cmpf ogt, %18, %19 : vector<128x256xf32>
    %c0_8 = arith.constant 0 : index
    %c0_9 = arith.constant 0 : index
    %21 = vector.load %arg4[%c0_8, %c0_9] : memref<1x256xf32, #tpu.memory_space<vmem>>, vector<1x256xf32>
    %22 = vector.shape_cast %21 : vector<1x256xf32> to vector<1x256xf32>
    %23 = vector.broadcast %22 : vector<1x256xf32> to vector<128x256xf32>
    %24 = arith.select %20, %16, %23 : vector<128x256xi1>, vector<128x256xf32>
    %cst_10 = arith.constant dense<0xFF800000> : vector<128xf32>
    %25 = vector.multi_reduction <maximumf>, %24, %cst_10 [1] : vector<128x256xf32> to vector<128xf32>
    %26 = vector.shape_cast %25 : vector<128xf32> to vector<128x1xf32>
    %27 = vector.broadcast %26 : vector<128x1xf32> to vector<128x256xf32>
    %28 = arith.subf %24, %27 : vector<128x256xf32>
    %29 = math.exp %28 : vector<128x256xf32>
    %cst_11 = arith.constant dense<0.000000e+00> : vector<128xf32>
    %30 = vector.multi_reduction <add>, %29, %cst_11 [1] : vector<128x256xf32> to vector<128xf32>
    %31 = vector.shape_cast %30 : vector<128xf32> to vector<128x1xf32>
    %32 = tpu.reciprocal %31 {approx = true} : vector<128x1xf32> -> vector<128x1xf32>
    %33 = vector.broadcast %32 : vector<128x1xf32> to vector<128x256xf32>
    %34 = arith.mulf %29, %33 : vector<128x256xf32>
    %35 = arith.truncf %34 : vector<128x256xf32> to vector<128x256xbf16>
    %c0_12 = arith.constant 0 : index
    %c0_13 = arith.constant 0 : index
    %36 = vector.load %arg5[%c0_12, %c0_13] : memref<256x128xbf16, #tpu.memory_space<vmem>>, vector<256x128xbf16>
    %cst_14 = arith.constant dense<0.000000e+00> : vector<128x128xf32>
    %37 = tpu.matmul %35, %36, %cst_14 {dimension_numbers = #tpu.dot_dimension_numbers<[1], [0], [0], [1], [0, 0, 1, 1], [], []>} : vector<128x256xbf16>, vector<256x128xbf16>, vector<128x128xf32> -> vector<128x128xf32>
    %cst_15 = arith.constant 0.000000e+00 : f32
    %38 = vector.broadcast %cst_15 : f32 to vector<128x128xf32>
    %39 = arith.cmpf ogt, %37, %38 : vector<128x128xf32>
    %cst_16 = arith.constant 0.000000e+00 : f32
    %40 = vector.broadcast %cst_16 : f32 to vector<128x128xf32>
    %41 = arith.minimumf %37, %40 : vector<128x128xf32>
    %42 = math.exp %41 : vector<128x128xf32>
    %cst_17 = arith.constant 1.000000e+00 : f32
    %43 = vector.broadcast %cst_17 : f32 to vector<128x128xf32>
    %44 = arith.subf %42, %43 : vector<128x128xf32>
    %45 = arith.select %39, %37, %44 : vector<128x128xi1>, vector<128x128xf32>
    %c0_18 = arith.constant 0 : index
    %c0_19 = arith.constant 0 : index
    %46 = vector.load %arg6[%c0_18, %c0_19] : memref<128x128xf32, #tpu.memory_space<vmem>>, vector<128x128xf32>
    tpu.vector_store %arg6[%c0_18, %c0_19], %45 {strides = array<i32>} : memref<128x128xf32, #tpu.memory_space<vmem>>, vector<128x128xf32>,
    %c0_20 = arith.constant 0 : index
    %c0_21 = arith.constant 0 : index
    %47 = vector.load %arg7[%c0_20, %c0_21] : memref<128x256xf32, #tpu.memory_space<vmem>>, vector<128x256xf32>
    tpu.vector_store %arg7[%c0_20, %c0_21], %34 {strides = array<i32>} : memref<128x256xf32, #tpu.memory_space<vmem>>, vector<128x256xf32>,
    return
  }
  func.func @transform_0(%arg0: i32) -> (i32, i32) {
    %c0_i32 = arith.constant 0 : i32
    %c0_i32_0 = arith.constant 0 : i32
    return %arg0, %c0_i32 : i32, i32
  }
  func.func @transform_1(%arg0: i32) -> (i32, i32) {
    %c0_i32 = arith.constant 0 : i32
    %c0_i32_0 = arith.constant 0 : i32
    %c0_i32_1 = arith.constant 0 : i32
    return %c0_i32, %c0_i32_0 : i32, i32
  }
  func.func @transform_2(%arg0: i32) -> (i32, i32) {
    %c0_i32 = arith.constant 0 : i32
    %c0_i32_0 = arith.constant 0 : i32
    %c0_i32_1 = arith.constant 0 : i32
    return %c0_i32, %c0_i32_0 : i32, i32
  }
  func.func @transform_3(%arg0: i32) -> (i32, i32) {
    %c0_i32 = arith.constant 0 : i32
    %c0_i32_0 = arith.constant 0 : i32
    %c0_i32_1 = arith.constant 0 : i32
    return %c0_i32, %c0_i32_0 : i32, i32
  }
  func.func @transform_4(%arg0: i32) -> (i32, i32) {
    %c0_i32 = arith.constant 0 : i32
    %c0_i32_0 = arith.constant 0 : i32
    %c0_i32_1 = arith.constant 0 : i32
    return %c0_i32, %c0_i32_0 : i32, i32
  }
  func.func @transform_5(%arg0: i32) -> (i32, i32) {
    %c0_i32 = arith.constant 0 : i32
    %c0_i32_0 = arith.constant 0 : i32
    return %arg0, %c0_i32 : i32, i32
  }
  func.func @transform_6(%arg0: i32) -> (i32, i32) {
    %c0_i32 = arith.constant 0 : i32
    %c0_i32_0 = arith.constant 0 : i32
    return %arg0, %c0_i32 : i32, i32
  }
}

</mosaic_0001>

<llo_original>
// kernel: graph_attention_layer.2
$region0: #{graph_attention_layer.2}
  #allocation0 [shape = 'u32[]', space=smem, size = 0x4, offset = 0x4, fixed_abs, tag = 'smem constant byte address 0x4 - core index']
  #allocation1 [shape = 'u32[144,128]{1,0:T(1,128)}', space=vmem, size = 0x12000, scoped, tag = 'internal scratch']
  %s0 = inlined_call_operand.vmem [shape: bf16[256,32], index: 0, kind: input, shape index: {}]
  %s1 = inlined_call_operand.vmem [shape: bf16[32,128], index: 1, kind: input, shape index: {}]
  %s2 = inlined_call_operand.vmem [shape: f32[1,128], index: 2, kind: input, shape index: {}]
  %s3 = inlined_call_operand.vmem [shape: bf16[256,128], index: 3, kind: output, shape index: {0}]
  %s4 = inlined_call_operand.vmem [shape: f32[1,256], index: 4, kind: output, shape index: {1}]
  %5 = xla_tuple %s3, %s4
  %s6 = sld [smem:[#allocation0]]
  $region53: #{graph_attention_layer.2} parent=0
    _
  %s8 = ssub.s32 1, %s6
  %s9 = scalar_select 0, %s8, %s6
  loop: start=0, step=1, limit=4
  $region2: #{graph_attention_layer.2} parent=0 // loop_pre_header
    _
  $region3: #{graph_attention_layer.2} parent=0 // loop_header
    %s11 = sphi 0, %s15
    %p12 = scmp.ge.s32.totalorder %s11, 4
    %s21 = sphi 0, %s23
    %s24 = sphi 0, %s21
    %s25 = sphi 0, %s24
    %s41 = sphi 0, %s25
    %s45 = sphi 0, %s45
    %s47 = sphi 0, %s45
    %s48 = sphi 0, %s47
    %s62 = sphi 0, %s48
    %s66 = sphi 0, %s66
    %s68 = sphi 0, %s66
    %s69 = sphi 0, %s68
    %s83 = sphi 0, %s69
    %s89 = sphi 0, %s91
    %s92 = sphi 0, %s89
    %s93 = sphi 0, %s92
    %s109 = sphi 0, %s93
    %s115 = sphi 0, %s117
    %s118 = sphi 0, %s115
    %s119 = sphi 0, %s118
    %s135 = sphi 0, %s119
  $region4: #{graph_attention_layer.2} parent=0 // loop_header_branch
    %14 = sbr.rel (%p12) target = $region8
  $region5: #{graph_attention_layer.2} parent=0 // loop_body
    %s16 = ssub.s32 %s11, 1
    %s17 = ssub.s32 %s11, 2
    %s18 = sadd.s32 %s11, 1
    %s19 = ssub.s32 %s11, %s18
    %p20 = scmp.eq.s32.totalorder %s19, 0
    %s22 = sadd.s32 %s21, 1
    %s23 = scalar_select %p20, %s21, %s22
    %p26 = pneg %p20
    %p27 = scmp.eq.s32.totalorder %s11, 1
    %p28 = por %p26, %p27
    %p29 = scmp.ne.s32.totalorder %s21, %s24
    %p30 = scmp.eq.s32.totalorder %s11, 0
    %p31 = por %p29, %p30
    %p32 = scmp.ne.s32.totalorder %s21, %s24
    %p33 = scmp.eq.s32.totalorder %s16, 1
    %p34 = por %p32, %p33
    %p35 = scmp.ne.s32.totalorder %s24, %s25
    %p36 = scmp.eq.s32.totalorder %s16, 0
    %p37 = por %p35, %p36
    %p38 = scmp.ne.s32.totalorder %s24, %s25
    %p39 = scmp.eq.s32.totalorder %s17, 1
    %p40 = por %p38, %p39
    %p42 = scmp.ne.s32.totalorder %s25, %s41
    %p43 = scmp.eq.s32.totalorder %s17, 0
    %p44 = por %p42, %p43
    %s46 = sadd.s32 %s45, 1
    %p49 = scmp.eq.s32.totalorder %s11, 1
    %p50 = scmp.ne.s32.totalorder %s45, %s47
    %p51 = scmp.eq.s32.totalorder %s11, 0
    %p52 = por %p50, %p51
    %p53 = scmp.ne.s32.totalorder %s45, %s47
    %p54 = scmp.eq.s32.totalorder %s16, 1
    %p55 = por %p53, %p54
    %p56 = scmp.ne.s32.totalorder %s47, %s48
    %p57 = scmp.eq.s32.totalorder %s16, 0
    %p58 = por %p56, %p57
    %p59 = scmp.ne.s32.totalorder %s47, %s48
    %p60 = scmp.eq.s32.totalorder %s17, 1
    %p61 = por %p59, %p60
    %p63 = scmp.ne.s32.totalorder %s48, %s62
    %p64 = scmp.eq.s32.totalorder %s17, 0
    %p65 = por %p63, %p64
    %s67 = sadd.s32 %s66, 1
    %p70 = scmp.eq.s32.totalorder %s11, 1
    %p71 = scmp.ne.s32.totalorder %s66, %s68
    %p72 = scmp.eq.s32.totalorder %s11, 0
    %p73 = por %p71, %p72
    %p74 = scmp.ne.s32.totalorder %s66, %s68
    %p75 = scmp.eq.s32.totalorder %s16, 1
    %p76 = por %p74, %p75
    %p77 = scmp.ne.s32.totalorder %s68, %s69
    %p78 = scmp.eq.s32.totalorder %s16, 0
    %p79 = por %p77, %p78
    %p80 = scmp.ne.s32.totalorder %s68, %s69
    %p81 = scmp.eq.s32.totalorder %s17, 1
    %p82 = por %p80, %p81
    %p84 = scmp.ne.s32.totalorder %s69, %s83
    %p85 = scmp.eq.s32.totalorder %s17, 0
    %p86 = por %p84, %p85
    %s87 = ssub.s32 %s11, %s18
    %p88 = scmp.eq.s32.totalorder %s87, 0
    %s90 = sadd.s32 %s89, 1
    %s91 = scalar_select %p88, %s89, %s90
    %p94 = pneg %p88
    %p95 = scmp.eq.s32.totalorder %s11, 1
    %p96 = por %p94, %p95
    %p97 = scmp.ne.s32.totalorder %s89, %s92
    %p98 = scmp.eq.s32.totalorder %s11, 0
    %p99 = por %p97, %p98
    %p100 = scmp.ne.s32.totalorder %s89, %s92
    %p101 = scmp.eq.s32.totalorder %s16, 1
    %p102 = por %p100, %p101
    %p103 = scmp.ne.s32.totalorder %s92, %s93
    %p104 = scmp.eq.s32.totalorder %s16, 0
    %p105 = por %p103, %p104
    %p106 = scmp.ne.s32.totalorder %s92, %s93
    %p107 = scmp.eq.s32.totalorder %s17, 1
    %p108 = por %p106, %p107
    %p110 = scmp.ne.s32.totalorder %s93, %s109
    %p111 = scmp.eq.s32.totalorder %s17, 0
    %p112 = por %p110, %p111
    %s113 = ssub.s32 %s11, %s18
    %p114 = scmp.eq.s32.totalorder %s113, 0
    %s116 = sadd.s32 %s115, 1
    %s117 = scalar_select %p114, %s115, %s116
    %p120 = pneg %p114
    %p121 = scmp.eq.s32.totalorder %s11, 1
    %p122 = por %p120, %p121
    %p123 = scmp.ne.s32.totalorder %s115, %s118
    %p124 = scmp.eq.s32.totalorder %s11, 0
    %p125 = por %p123, %p124
    %p126 = scmp.ne.s32.totalorder %s115, %s118
    %p127 = scmp.eq.s32.totalorder %s16, 1
    %p128 = por %p126, %p127
    %p129 = scmp.ne.s32.totalorder %s118, %s119
    %p130 = scmp.eq.s32.totalorder %s16, 0
    %p131 = por %p129, %p130
    %p132 = scmp.ne.s32.totalorder %s118, %s119
    %p133 = scmp.eq.s32.totalorder %s17, 1
    %p134 = por %p132, %p133
    %p136 = scmp.ne.s32.totalorder %s119, %s135
    %p137 = scmp.eq.s32.totalorder %s17, 0
    %p138 = por %p136, %p137
    %p139 = scmp.le.s32.totalorder 1, %s11
    %p140 = scmp.lt.s32.totalorder %s11, 3
    %p141 = pnand %p139, %p140
    %p142 = pneg %p141
    // Predicated region
    $region9: #{graph_attention_layer.2} parent=5 // pred_check
      _
    $region10: #{graph_attention_layer.2} parent=5 // pred_check_branch
      %144 = sbr.rel (%p141) target = $region12
    $region11: #{graph_attention_layer.2} parent=5 // pred_region
      %s145 = ssub.s32 %s11, 1
      // Predicated region
      $region13: #{graph_attention_layer.2} parent=11 // pred_check
        %p146 = pneg %p58
      $region14: #{graph_attention_layer.2} parent=11 // pred_check_branch
        %148 = sbr.rel (%p146) target = $region16
      $region15: #{graph_attention_layer.2} parent=11 // pred_region
        _
      $region16: #{graph_attention_layer.2} parent=11 // pred_fallthru
        _
      // Predicated region
      $region17: #{graph_attention_layer.2} parent=11 // pred_check
        %p149 = pneg %p79
      $region18: #{graph_attention_layer.2} parent=11 // pred_check_branch
        %151 = sbr.rel (%p149) target = $region20
      $region19: #{graph_attention_layer.2} parent=11 // pred_region
        _
      $region20: #{graph_attention_layer.2} parent=11 // pred_fallthru
        _
    $region12: #{graph_attention_layer.2} parent=5 // pred_fallthru
      _
    %p152 = scmp.lt.s32.totalorder %s11, 2
    // Predicated region
    $region21: #{graph_attention_layer.2} parent=5 // pred_check
      %p153 = pneg %p152
    $region22: #{graph_attention_layer.2} parent=5 // pred_check_branch
      %155 = sbr.rel (%p153) target = $region24
    $region23: #{graph_attention_layer.2} parent=5 // pred_region
      // Predicated region
      $region25: #{graph_attention_layer.2} parent=23 // pred_check
        %p156 = pneg %p31
      $region26: #{graph_attention_layer.2} parent=23 // pred_check_branch
        %158 = sbr.rel (%p156) target = $region28
      $region27: #{graph_attention_layer.2} parent=23 // pred_region
        %s159 = smul.u32 16, %s11
        %p160 = scmp.lt.s32.totalorder %s159, 31
        %s161 = scalar_select %p160, %s159, 31
        %s162 = smul.addr %s161, 4
        %s163 = scalar_lea.vmem %s0, %s162
        %s164 = smul.u32 16, %s11
      $region28: #{graph_attention_layer.2} parent=23 // pred_fallthru
        _
    $region24: #{graph_attention_layer.2} parent=5 // pred_fallthru
      _
    %p165 = scmp.le.s32.totalorder 1, %s11
    %p166 = scmp.lt.s32.totalorder %s11, 3
    %p167 = pnand %p165, %p166
    %p168 = pneg %p167
    // Predicated region
    $region29: #{graph_attention_layer.2} parent=5 // pred_check
      _
    $region30: #{graph_attention_layer.2} parent=5 // pred_check_branch
      %170 = sbr.rel (%p167) target = $region32
    $region31: #{graph_attention_layer.2} parent=5 // pred_region
      %s171 = ssub.s32 %s11, 1
      %s172 = smul.u32 16, %s16
      %p173 = scmp.lt.s32.totalorder %s172, 31
      %s174 = scalar_select %p173, %s172, 31
      %s175 = smul.addr %s174, 4
      %s176 = scalar_lea.vmem %s0, %s175
      %p177 = pneg %p37
      %p178 = pneg %p34
      %p179 = pneg %p58
      %p180 = pneg %p55
      %p181 = pneg %p79
      %p182 = pneg %p76
      %p183 = pneg %p105
      %p184 = pneg %p102
      %s185 = smul.u32 16, %s16
      %p186 = scmp.lt.s32.totalorder %s185, 31
      %s187 = scalar_select %p186, %s185, 31
      %s188 = smul.addr %s187, 4
      %s189 = scalar_lea.vmem %s3, %s188
      %p190 = pneg %p131
      %p191 = pneg %p128
      %p192 = scmp.lt.s32.totalorder %s16, 1
      %s193 = scalar_select %p192, %s16, 1
      %s194 = scalar_lea.vmem %s4, %s193
      %s195 = smul.u32 16, %s16
      %p196 = scmp.lt.s32.totalorder %s195, 31
      %s197 = scalar_select %p196, %s195, 31
      %s198 = smul.addr %s197, 4
      %s199 = scalar_lea.vmem %s0, %s198
      %s200 = smul.u32 16, %s16
      %s201 = smul.u32 16, %s16
      %p202 = scmp.lt.s32.totalorder %s201, 31
      %s203 = scalar_select %p202, %s201, 31
      %s204 = smul.addr %s203, 4
      %s205 = scalar_lea.vmem %s3, %s204
      %s206 = smul.u32 16, %s16
      %p207 = scmp.lt.s32.totalorder %s16, 1
      %s208 = scalar_select %p207, %s16, 1
      %s209 = scalar_lea.vmem %s4, %s208
      %v211 = vld [vmem:[%s199] sm:$0xf]
      %v212 = vld [vmem:[%s199 + $0x4] sm:$0xf]
      %v213 = vld [vmem:[%s199 + $0x8] sm:$0xf]
      %v214 = vld [vmem:[%s199 + $0xc] sm:$0xf]
      %v215 = vld [vmem:[%s199 + $0x10] sm:$0xf]
      %v216 = vld [vmem:[%s199 + $0x14] sm:$0xf]
      %v217 = vld [vmem:[%s199 + $0x18] sm:$0xf]
      %v218 = vld [vmem:[%s199 + $0x1c] sm:$0xf]
      %v219 = vld [vmem:[%s199 + $0x20] sm:$0xf]
      %v220 = vld [vmem:[%s199 + $0x24] sm:$0xf]
      %v221 = vld [vmem:[%s199 + $0x28] sm:$0xf]
      %v222 = vld [vmem:[%s199 + $0x2c] sm:$0xf]
      %v223 = vld [vmem:[%s199 + $0x30] sm:$0xf]
      %v224 = vld [vmem:[%s199 + $0x34] sm:$0xf]
      %v225 = vld [vmem:[%s199 + $0x38] sm:$0xf]
      %v226 = vld [vmem:[%s199 + $0x3c] sm:$0xf]
      %v227 = vld [vmem:[%s1] sm:$0xf]
      %v228 = vld [vmem:[%s1 + $0x4] sm:$0xf]
      %v229 = vld [vmem:[%s1 + $0x8] sm:$0xf]
      %v230 = vld [vmem:[%s1 + $0xc] sm:$0xf]
      %v247 = vunpack.c.l.b16 %v211
      %v248 = vunpack.c.l.b16 %v212
      %v249 = vunpack.c.l.b16 %v213
      %v250 = vunpack.c.l.b16 %v214
      %v251 = vunpack.c.l.b16 %v215
      %v252 = vunpack.c.l.b16 %v216
      %v253 = vunpack.c.l.b16 %v217
      %v254 = vunpack.c.l.b16 %v218
      %v255 = vunpack.c.l.b16 %v219
      %v256 = vunpack.c.l.b16 %v220
      %v257 = vunpack.c.l.b16 %v221
      %v258 = vunpack.c.l.b16 %v222
      %v259 = vunpack.c.l.b16 %v223
      %v260 = vunpack.c.l.b16 %v224
      %v261 = vunpack.c.l.b16 %v225
      %v262 = vunpack.c.l.b16 %v226
      %v263 = vpack.c.b16 %v248, %v247
      %v264 = vpack.c.b16 %v250, %v249
      %v265 = vpack.c.b16 %v252, %v251
      %v266 = vpack.c.b16 %v254, %v253
      %v267 = vpack.c.b16 %v256, %v255
      %v268 = vpack.c.b16 %v258, %v257
      %v269 = vpack.c.b16 %v260, %v259
      %v270 = vpack.c.b16 %v262, %v261
      %v275 = vunpack.c.l.b16 %v227
      %v276 = vunpack.c.l.b16 %v228
      %v277 = vunpack.c.l.b16 %v229
      %v278 = vunpack.c.l.b16 %v230
      %v279 = vpack.c.b16 %v276, %v275
      %v280 = vpack.c.b16 %v278, %v277
      %vm283 = vcmask 261120
      %v285 = vsel %vm283, %v263, 0
      %v288 = vsel %vm283, %v264, 0
      %v291 = vsel %vm283, %v265, 0
      %v294 = vsel %vm283, %v266, 0
      %v297 = vsel %vm283, %v267, 0
      %v300 = vsel %vm283, %v268, 0
      %v303 = vsel %vm283, %v269, 0
      %v306 = vsel %vm283, %v270, 0
      %308 = vmatprep.subr.bf16.mxu0 0
      %309 = vmatpush1.bf16.msra.mxu0 %v279
      %310 = vmatprep.subr.bf16.mxu0 0
      %311 = vmatpush1.bf16.msra.mxu0 %v280
      %312 = vmatprep.subr.bf16.mxu0 0
      %313 = vmatpush1.bf16.msra.mxu0 0
      %314 = vmatprep.subr.bf16.mxu0 0
      %315 = vmatpush1.bf16.msra.mxu0 0
      %316 = vmatprep.subr.bf16.mxu0 0
      %317 = vmatpush1.bf16.msra.mxu0 0
      %318 = vmatprep.subr.bf16.mxu0 0
      %319 = vmatpush1.bf16.msra.mxu0 0
      %320 = vmatprep.subr.bf16.mxu0 0
      %321 = vmatpush1.bf16.msra.mxu0 0
      %322 = vmatprep.subr.bf16.mxu0 0
      %323 = vmatpush1.bf16.msra.mxu0 0
      %324 = vmatprep.subr.bf16.mxu0 0
      %325 = vmatpush1.bf16.msra.mxu0 0
      %326 = vmatprep.subr.bf16.mxu0 0
      %327 = vmatpush1.bf16.msra.mxu0 0
      %328 = vmatprep.subr.bf16.mxu0 0
      %329 = vmatpush1.bf16.msra.mxu0 0
      %330 = vmatprep.subr.bf16.mxu0 0
      %331 = vmatpush1.bf16.msra.mxu0 0
      %332 = vmatprep.subr.bf16.mxu0 0
      %333 = vmatpush1.bf16.msra.mxu0 0
      %334 = vmatprep.subr.bf16.mxu0 0
      %335 = vmatpush1.bf16.msra.mxu0 0
      %336 = vmatprep.subr.bf16.mxu0 0
      %337 = vmatpush1.bf16.msra.mxu0 0
      %338 = vmatprep.subr.bf16.mxu0 0
      %339 = vmatpush1.bf16.msra.mxu0 0
      %340 = vmatprep.mubr.bf16.mxu0 0
      %341 = vmatmul.mubr.bf16.gmra.mrb[0].mxu0 %v285
      %v342 = vpop.f32.mrb[0].mxu0
      %v343 = vadd.f32 0.0, %v342
      %v344 = vpop.f32.mrb[0].mxu0
      %v345 = vpop.f32.mrb[0].mxu0
      %v346 = vadd.f32 0.0, %v345
      %v347 = vpop.f32.mrb[0].mxu0
      %348 = vmatprep.mubr.bf16.mxu0 0
      %349 = vmatmul.mubr.bf16.gmra.mrb[0].mxu0 %v288
      %v350 = vpop.f32.mrb[0].mxu0
      %v351 = vadd.f32 0.0, %v350
      %v352 = vpop.f32.mrb[0].mxu0
      %v353 = vpop.f32.mrb[0].mxu0
      %v354 = vadd.f32 0.0, %v353
      %v355 = vpop.f32.mrb[0].mxu0
      %356 = vmatprep.mubr.bf16.mxu0 0
      %357 = vmatmul.mubr.bf16.gmra.mrb[0].mxu0 %v291
      %v358 = vpop.f32.mrb[0].mxu0
      %v359 = vadd.f32 0.0, %v358
      %v360 = vpop.f32.mrb[0].mxu0
      %v361 = vpop.f32.mrb[0].mxu0
      %v362 = vadd.f32 0.0, %v361
      %v363 = vpop.f32.mrb[0].mxu0
      %364 = vmatprep.mubr.bf16.mxu0 0
      %365 = vmatmul.mubr.bf16.gmra.mrb[0].mxu0 %v294
      %v366 = vpop.f32.mrb[0].mxu0
      %v367 = vadd.f32 0.0, %v366
      %v368 = vpop.f32.mrb[0].mxu0
      %v369 = vpop.f32.mrb[0].mxu0
      %v370 = vadd.f32 0.0, %v369
      %v371 = vpop.f32.mrb[0].mxu0
      %372 = vmatprep.mubr.bf16.mxu0 0
      %373 = vmatmul.mubr.bf16.gmra.mrb[0].mxu0 %v297
      %v374 = vpop.f32.mrb[0].mxu0
      %v375 = vadd.f32 0.0, %v374
      %v376 = vpop.f32.mrb[0].mxu0
      %v377 = vpop.f32.mrb[0].mxu0
      %v378 = vadd.f32 0.0, %v377
      %v379 = vpop.f32.mrb[0].mxu0
      %380 = vmatprep.mubr.bf16.mxu0 0
      %381 = vmatmul.mubr.bf16.gmra.mrb[0].mxu0 %v300
      %v382 = vpop.f32.mrb[0].mxu0
      %v383 = vadd.f32 0.0, %v382
      %v384 = vpop.f32.mrb[0].mxu0
      %v385 = vpop.f32.mrb[0].mxu0
      %v386 = vadd.f32 0.0, %v385
      %v387 = vpop.f32.mrb[0].mxu0
      %388 = vmatprep.mubr.bf16.mxu0 0
      %389 = vmatmul.mubr.bf16.gmra.mrb[0].mxu0 %v303
      %v390 = vpop.f32.mrb[0].mxu0
      %v391 = vadd.f32 0.0, %v390
      %v392 = vpop.f32.mrb[0].mxu0
      %v393 = vpop.f32.mrb[0].mxu0
      %v394 = vadd.f32 0.0, %v393
      %v395 = vpop.f32.mrb[0].mxu0
      %396 = vmatprep.mubr.bf16.mxu0 0
      %397 = vmatmul.mubr.bf16.gmra.mrb[0].mxu0 %v306
      %v398 = vpop.f32.mrb[0].mxu0
      %v399 = vadd.f32 0.0, %v398
      %v400 = vpop.f32.mrb[0].mxu0
      %v401 = vpop.f32.mrb[0].mxu0
      %v402 = vadd.f32 0.0, %v401
      %v403 = vpop.f32.mrb[0].mxu0
      %404 = vdwg.mxu0
      %v405 = vld [vmem:[%s2] sm:$0x1]
      %406 = vmatprep.subr.mxu0 0.0
      %407 = vmatpush1.xpose.msra.mxu0 %v343
      %408 = vmatprep.subr.mxu0 0.0
      %409 = vmatpush1.xpose.msra.mxu0 %v346
      %410 = vmatprep.subr.mxu0 0.0
      %411 = vmatpush1.xpose.msra.mxu0 %v351
      %412 = vmatprep.subr.mxu0 0.0
      %413 = vmatpush1.xpose.msra.mxu0 %v354
      %414 = vmatprep.subr.mxu0 0.0
      %415 = vmatpush1.xpose.msra.mxu0 %v359
      %416 = vmatprep.subr.mxu0 0.0
      %417 = vmatpush1.xpose.msra.mxu0 %v362
      %418 = vmatprep.subr.mxu0 0.0
      %419 = vmatpush1.xpose.msra.mxu0 %v367
      %420 = vmatprep.subr.mxu0 0.0
      %421 = vmatpush1.xpose.msra.mxu0 %v370
      %422 = vmatprep.subr.mxu0 0.0
      %423 = vmatpush1.xpose.msra.mxu0 %v375
      %424 = vmatprep.subr.mxu0 0.0
      %425 = vmatpush1.xpose.msra.mxu0 %v378
      %426 = vmatprep.subr.mxu0 0.0
      %427 = vmatpush1.xpose.msra.mxu0 %v383
      %428 = vmatprep.subr.mxu0 0.0
      %429 = vmatpush1.xpose.msra.mxu0 %v386
      %430 = vmatprep.subr.mxu0 0.0
      %431 = vmatpush1.xpose.msra.mxu0 %v391
      %432 = vmatprep.subr.mxu0 0.0
      %433 = vmatpush1.xpose.msra.mxu0 %v394
      %434 = vmatprep.subr.mxu0 0.0
      %435 = vmatpush1.xpose.msra.mxu0 %v399
      %436 = vmatprep.subr.mxu0 0.0
      %437 = vmatpush1.xpose.msra.mxu0 %v402
      %438 = vmatprep.subr.mxu0 0.0
      %439 = vmatpush1.xpose.msra.mxu0 0.0
      %440 = vmatprep.subr.mxu0 0.0
      %441 = vmatpush1.xpose.msra.mxu0 0.0
      %442 = vmatprep.subr.mxu0 0.0
      %443 = vmatpush1.xpose.msra.mxu0 0.0
      %444 = vmatprep.subr.mxu0 0.0
      %445 = vmatpush1.xpose.msra.mxu0 0.0
      %446 = vmatprep.subr.mxu0 0.0
      %447 = vmatpush1.xpose.msra.mxu0 0.0
      %448 = vmatprep.subr.mxu0 0.0
      %449 = vmatpush1.xpose.msra.mxu0 0.0
      %450 = vmatprep.subr.mxu0 0.0
      %451 = vmatpush1.xpose.msra.mxu0 0.0
      %452 = vmatprep.subr.mxu0 0.0
      %453 = vmatpush1.xpose.msra.mxu0 0.0
      %454 = vmatprep.subr.mxu0 0.0
      %455 = vmatpush1.xpose.msra.mxu0 0.0
      %456 = vmatprep.subr.mxu0 0.0
      %457 = vmatpush1.xpose.msra.mxu0 0.0
      %458 = vmatprep.subr.mxu0 0.0
      %459 = vmatpush1.xpose.msra.mxu0 0.0
      %460 = vmatprep.subr.mxu0 0.0
      %461 = vmatpush1.xpose.msra.mxu0 0.0
      %462 = vmatprep.subr.mxu0 0.0
      %463 = vmatpush1.xpose.msra.mxu0 0.0
      %464 = vmatprep.subr.mxu0 0.0
      %465 = vmatpush1.xpose.msra.mxu0 0.0
      %466 = vmatprep.subr.mxu0 0.0
      %467 = vmatpush1.xpose.msra.mxu0 0.0
      %468 = vmatprep.subr.mxu0 0.0
      %469 = vmatpush1.xpose.msra.mxu0 0.0
      %470 = vmatprep.mubr.f32.mxu0 0.0
      %471 = vmatmul.mubr.f32.gmra.mrb[0].mxu0 %v405
      %v472 = vpop.f32.mrb[0].mxu0
      %v473 = vadd.f32 0.0, %v472
      %v474 = vpop.f32.mrb[0].mxu0
      %475 = vdwg.mxu0
      %476 = vst [vmem:[%s209] sm:$0x1] %v473
      %v477 = vpack.c.bf16 %v346, %v343
      %v478 = vpack.c.bf16 %v354, %v351
      %v479 = vpack.c.bf16 %v362, %v359
      %v480 = vpack.c.bf16 %v370, %v367
      %v481 = vpack.c.bf16 %v378, %v375
      %v482 = vpack.c.bf16 %v386, %v383
      %v483 = vpack.c.bf16 %v394, %v391
      %v484 = vpack.c.bf16 %v402, %v399
      %v493 = vunpack.c.l.b16 %v477
      %v494 = vunpack.c.h.b16 %v477
      %v495 = vunpack.c.l.b16 %v478
      %v496 = vunpack.c.h.b16 %v478
      %v497 = vunpack.c.l.b16 %v479
      %v498 = vunpack.c.h.b16 %v479
      %v499 = vunpack.c.l.b16 %v480
      %v500 = vunpack.c.h.b16 %v480
      %v501 = vunpack.c.l.b16 %v481
      %v502 = vunpack.c.h.b16 %v481
      %v503 = vunpack.c.l.b16 %v482
      %v504 = vunpack.c.h.b16 %v482
      %v505 = vunpack.c.l.b16 %v483
      %v506 = vunpack.c.h.b16 %v483
      %v507 = vunpack.c.l.b16 %v484
      %v508 = vunpack.c.h.b16 %v484
      %v509 = vpack.c.b16 %v493, %v493
      %v510 = vpack.c.b16 %v494, %v494
      %v511 = vpack.c.b16 %v495, %v495
      %v512 = vpack.c.b16 %v496, %v496
      %v513 = vpack.c.b16 %v497, %v497
      %v514 = vpack.c.b16 %v498, %v498
      %v515 = vpack.c.b16 %v499, %v499
      %v516 = vpack.c.b16 %v500, %v500
      %v517 = vpack.c.b16 %v501, %v501
      %v518 = vpack.c.b16 %v502, %v502
      %v519 = vpack.c.b16 %v503, %v503
      %v520 = vpack.c.b16 %v504, %v504
      %v521 = vpack.c.b16 %v505, %v505
      %v522 = vpack.c.b16 %v506, %v506
      %v523 = vpack.c.b16 %v507, %v507
      %v524 = vpack.c.b16 %v508, %v508
      %541 = vst [vmem:[%s205] sm:$0xf] %v509
      %542 = vst [vmem:[%s205 + $0x4] sm:$0xf] %v510
      %543 = vst [vmem:[%s205 + $0x8] sm:$0xf] %v511
      %544 = vst [vmem:[%s205 + $0xc] sm:$0xf] %v512
      %545 = vst [vmem:[%s205 + $0x10] sm:$0xf] %v513
      %546 = vst [vmem:[%s205 + $0x14] sm:$0xf] %v514
      %547 = vst [vmem:[%s205 + $0x18] sm:$0xf] %v515
      %548 = vst [vmem:[%s205 + $0x1c] sm:$0xf] %v516
      %549 = vst [vmem:[%s205 + $0x20] sm:$0xf] %v517
      %550 = vst [vmem:[%s205 + $0x24] sm:$0xf] %v518
      %551 = vst [vmem:[%s205 + $0x28] sm:$0xf] %v519
      %552 = vst [vmem:[%s205 + $0x2c] sm:$0xf] %v520
      %553 = vst [vmem:[%s205 + $0x30] sm:$0xf] %v521
      %554 = vst [vmem:[%s205 + $0x34] sm:$0xf] %v522
      %555 = vst [vmem:[%s205 + $0x38] sm:$0xf] %v523
      %556 = vst [vmem:[%s205 + $0x3c] sm:$0xf] %v524
      %s557 = smul.u32 16, %s16
      %p558 = scmp.lt.s32.totalorder %s557, 31
      %s559 = scalar_select %p558, %s557, 31
      %s560 = smul.addr %s559, 4
      %s561 = scalar_lea.vmem %s3, %s560
      %p562 = scmp.lt.s32.totalorder %s16, 1
      %s563 = scalar_select %p562, %s16, 1
      %s564 = scalar_lea.vmem %s4, %s563
      // Predicated region
      $region33: #{graph_attention_layer.2} parent=31 // pred_check
        %p565 = pneg %p102
      $region34: #{graph_attention_layer.2} parent=31 // pred_check_branch
        %567 = sbr.rel (%p565) target = $region36
      $region35: #{graph_attention_layer.2} parent=31 // pred_region
        %s568 = smul.u32 16, %s16
      $region36: #{graph_attention_layer.2} parent=31 // pred_fallthru
        _
      // Predicated region
      $region37: #{graph_attention_layer.2} parent=31 // pred_check
        %p569 = pneg %p128
      $region38: #{graph_attention_layer.2} parent=31 // pred_check_branch
        %571 = sbr.rel (%p569) target = $region40
      $region39: #{graph_attention_layer.2} parent=31 // pred_region
        _
      $region40: #{graph_attention_layer.2} parent=31 // pred_fallthru
        _
    $region32: #{graph_attention_layer.2} parent=5 // pred_fallthru
      _
    %p572 = scmp.le.s32.totalorder 2, %s11
    // Predicated region
    $region41: #{graph_attention_layer.2} parent=5 // pred_check
      %p573 = pneg %p572
    $region42: #{graph_attention_layer.2} parent=5 // pred_check_branch
      %575 = sbr.rel (%p573) target = $region44
    $region43: #{graph_attention_layer.2} parent=5 // pred_region
      %s576 = ssub.s32 %s11, 2
      // Predicated region
      $region45: #{graph_attention_layer.2} parent=43 // pred_check
        %p577 = pneg %p108
      $region46: #{graph_attention_layer.2} parent=43 // pred_check_branch
        %579 = sbr.rel (%p577) target = $region48
      $region47: #{graph_attention_layer.2} parent=43 // pred_region
        %s580 = smul.u32 16, %s17
        %p581 = scmp.lt.s32.totalorder %s580, 31
        %s582 = scalar_select %p581, %s580, 31
        %s583 = smul.addr %s582, 4
        %s584 = scalar_lea.vmem %s3, %s583
      $region48: #{graph_attention_layer.2} parent=43 // pred_fallthru
        _
      // Predicated region
      $region49: #{graph_attention_layer.2} parent=43 // pred_check
        %p585 = pneg %p134
      $region50: #{graph_attention_layer.2} parent=43 // pred_check_branch
        %587 = sbr.rel (%p585) target = $region52
      $region51: #{graph_attention_layer.2} parent=43 // pred_region
        %p588 = scmp.lt.s32.totalorder %s17, 1
        %s589 = scalar_select %p588, %s17, 1
        %s590 = scalar_lea.vmem %s4, %s589
      $region52: #{graph_attention_layer.2} parent=43 // pred_fallthru
        _
    $region44: #{graph_attention_layer.2} parent=5 // pred_fallthru
      _
  $region6: #{graph_attention_layer.2} parent=0 // loop_footer
    %s15 = sadd.s32 1, %s11
  $region7: #{graph_attention_layer.2} parent=0 // loop_footer_branch
    %10 = sbr.rel target = $region3
  $region8: #{graph_attention_layer.2} parent=0 // loop_exit
    _

// kernel: graph_attention_layer.3
$region0: #{graph_attention_layer.3}
  #allocation0 [shape = 'u32[]', space=smem, size = 0x4, offset = 0x4, fixed_abs, tag = 'smem constant byte address 0x4 - core index']
  #allocation1 [shape = 'u32[144,128]{1,0:T(1,128)}', space=vmem, size = 0x12000, scoped, tag = 'internal scratch']
  %s0 = inlined_call_operand.vmem [shape: s8[256,256], index: 0, kind: input, shape index: {}]
  %s1 = inlined_call_operand.vmem [shape: f32[1,128], index: 1, kind: input, shape index: {}]
  %s2 = inlined_call_operand.vmem [shape: f32[1,256], index: 2, kind: input, shape index: {}]
  %s3 = inlined_call_operand.vmem [shape: f32[1,256], index: 3, kind: input, shape index: {}]
  %s4 = inlined_call_operand.vmem [shape: bf16[256,128], index: 4, kind: input, shape index: {}]
  %s5 = inlined_call_operand.vmem [shape: f32[256,128], index: 5, kind: output, shape index: {0}]
  %s6 = inlined_call_operand.vmem [shape: f32[256,256], index: 6, kind: output, shape index: {1}]
  %7 = xla_tuple %s5, %s6
  %s8 = sld [smem:[#allocation0]]
  $region61: #{graph_attention_layer.3} parent=0
    _
  %s10 = ssub.s32 1, %s8
  %s11 = scalar_select 0, %s10, %s8
  loop: start=0, step=1, limit=4
  $region2: #{graph_attention_layer.3} parent=0 // loop_pre_header
    _
  $region3: #{graph_attention_layer.3} parent=0 // loop_header
    %s13 = sphi 0, %s17
    %p14 = scmp.ge.s32.totalorder %s13, 4
    %s23 = sphi 0, %s25
    %s26 = sphi 0, %s23
    %s27 = sphi 0, %s26
    %s43 = sphi 0, %s27
    %s47 = sphi 0, %s47
    %s49 = sphi 0, %s47
    %s50 = sphi 0, %s49
    %s64 = sphi 0, %s50
    %s68 = sphi 0, %s68
    %s70 = sphi 0, %s68
    %s71 = sphi 0, %s70
    %s85 = sphi 0, %s71
    %s89 = sphi 0, %s89
    %s91 = sphi 0, %s89
    %s92 = sphi 0, %s91
    %s106 = sphi 0, %s92
    %s110 = sphi 0, %s110
    %s112 = sphi 0, %s110
    %s113 = sphi 0, %s112
    %s127 = sphi 0, %s113
    %s133 = sphi 0, %s135
    %s136 = sphi 0, %s133
    %s137 = sphi 0, %s136
    %s153 = sphi 0, %s137
    %s159 = sphi 0, %s161
    %s162 = sphi 0, %s159
    %s163 = sphi 0, %s162
    %s179 = sphi 0, %s163
  $region4: #{graph_attention_layer.3} parent=0 // loop_header_branch
    %16 = sbr.rel (%p14) target = $region8
  $region5: #{graph_attention_layer.3} parent=0 // loop_body
    %s18 = ssub.s32 %s13, 1
    %s19 = ssub.s32 %s13, 2
    %s20 = sadd.s32 %s13, 1
    %s21 = ssub.s32 %s13, %s20
    %p22 = scmp.eq.s32.totalorder %s21, 0
    %s24 = sadd.s32 %s23, 1
    %s25 = scalar_select %p22, %s23, %s24
    %p28 = pneg %p22
    %p29 = scmp.eq.s32.totalorder %s13, 1
    %p30 = por %p28, %p29
    %p31 = scmp.ne.s32.totalorder %s23, %s26
    %p32 = scmp.eq.s32.totalorder %s13, 0
    %p33 = por %p31, %p32
    %p34 = scmp.ne.s32.totalorder %s23, %s26
    %p35 = scmp.eq.s32.totalorder %s18, 1
    %p36 = por %p34, %p35
    %p37 = scmp.ne.s32.totalorder %s26, %s27
    %p38 = scmp.eq.s32.totalorder %s18, 0
    %p39 = por %p37, %p38
    %p40 = scmp.ne.s32.totalorder %s26, %s27
    %p41 = scmp.eq.s32.totalorder %s19, 1
    %p42 = por %p40, %p41
    %p44 = scmp.ne.s32.totalorder %s27, %s43
    %p45 = scmp.eq.s32.totalorder %s19, 0
    %p46 = por %p44, %p45
    %s48 = sadd.s32 %s47, 1
    %p51 = scmp.eq.s32.totalorder %s13, 1
    %p52 = scmp.ne.s32.totalorder %s47, %s49
    %p53 = scmp.eq.s32.totalorder %s13, 0
    %p54 = por %p52, %p53
    %p55 = scmp.ne.s32.totalorder %s47, %s49
    %p56 = scmp.eq.s32.totalorder %s18, 1
    %p57 = por %p55, %p56
    %p58 = scmp.ne.s32.totalorder %s49, %s50
    %p59 = scmp.eq.s32.totalorder %s18, 0
    %p60 = por %p58, %p59
    %p61 = scmp.ne.s32.totalorder %s49, %s50
    %p62 = scmp.eq.s32.totalorder %s19, 1
    %p63 = por %p61, %p62
    %p65 = scmp.ne.s32.totalorder %s50, %s64
    %p66 = scmp.eq.s32.totalorder %s19, 0
    %p67 = por %p65, %p66
    %s69 = sadd.s32 %s68, 1
    %p72 = scmp.eq.s32.totalorder %s13, 1
    %p73 = scmp.ne.s32.totalorder %s68, %s70
    %p74 = scmp.eq.s32.totalorder %s13, 0
    %p75 = por %p73, %p74
    %p76 = scmp.ne.s32.totalorder %s68, %s70
    %p77 = scmp.eq.s32.totalorder %s18, 1
    %p78 = por %p76, %p77
    %p79 = scmp.ne.s32.totalorder %s70, %s71
    %p80 = scmp.eq.s32.totalorder %s18, 0
    %p81 = por %p79, %p80
    %p82 = scmp.ne.s32.totalorder %s70, %s71
    %p83 = scmp.eq.s32.totalorder %s19, 1
    %p84 = por %p82, %p83
    %p86 = scmp.ne.s32.totalorder %s71, %s85
    %p87 = scmp.eq.s32.totalorder %s19, 0
    %p88 = por %p86, %p87
    %s90 = sadd.s32 %s89, 1
    %p93 = scmp.eq.s32.totalorder %s13, 1
    %p94 = scmp.ne.s32.totalorder %s89, %s91
    %p95 = scmp.eq.s32.totalorder %s13, 0
    %p96 = por %p94, %p95
    %p97 = scmp.ne.s32.totalorder %s89, %s91
    %p98 = scmp.eq.s32.totalorder %s18, 1
    %p99 = por %p97, %p98
    %p100 = scmp.ne.s32.totalorder %s91, %s92
    %p101 = scmp.eq.s32.totalorder %s18, 0
    %p102 = por %p100, %p101
    %p103 = scmp.ne.s32.totalorder %s91, %s92
    %p104 = scmp.eq.s32.totalorder %s19, 1
    %p105 = por %p103, %p104
    %p107 = scmp.ne.s32.totalorder %s92, %s106
    %p108 = scmp.eq.s32.totalorder %s19, 0
    %p109 = por %p107, %p108
    %s111 = sadd.s32 %s110, 1
    %p114 = scmp.eq.s32.totalorder %s13, 1
    %p115 = scmp.ne.s32.totalorder %s110, %s112
    %p116 = scmp.eq.s32.totalorder %s13, 0
    %p117 = por %p115, %p116
    %p118 = scmp.ne.s32.totalorder %s110, %s112
    %p119 = scmp.eq.s32.totalorder %s18, 1
    %p120 = por %p118, %p119
    %p121 = scmp.ne.s32.totalorder %s112, %s113
    %p122 = scmp.eq.s32.totalorder %s18, 0
    %p123 = por %p121, %p122
    %p124 = scmp.ne.s32.totalorder %s112, %s113
    %p125 = scmp.eq.s32.totalorder %s19, 1
    %p126 = por %p124, %p125
    %p128 = scmp.ne.s32.totalorder %s113, %s127
    %p129 = scmp.eq.s32.totalorder %s19, 0
    %p130 = por %p128, %p129
    %s131 = ssub.s32 %s13, %s20
    %p132 = scmp.eq.s32.totalorder %s131, 0
    %s134 = sadd.s32 %s133, 1
    %s135 = scalar_select %p132, %s133, %s134
    %p138 = pneg %p132
    %p139 = scmp.eq.s32.totalorder %s13, 1
    %p140 = por %p138, %p139
    %p141 = scmp.ne.s32.totalorder %s133, %s136
    %p142 = scmp.eq.s32.totalorder %s13, 0
    %p143 = por %p141, %p142
    %p144 = scmp.ne.s32.totalorder %s133, %s136
    %p145 = scmp.eq.s32.totalorder %s18, 1
    %p146 = por %p144, %p145
    %p147 = scmp.ne.s32.totalorder %s136, %s137
    %p148 = scmp.eq.s32.totalorder %s18, 0
    %p149 = por %p147, %p148
    %p150 = scmp.ne.s32.totalorder %s136, %s137
    %p151 = scmp.eq.s32.totalorder %s19, 1
    %p152 = por %p150, %p151
    %p154 = scmp.ne.s32.totalorder %s137, %s153
    %p155 = scmp.eq.s32.totalorder %s19, 0
    %p156 = por %p154, %p155
    %s157 = ssub.s32 %s13, %s20
    %p158 = scmp.eq.s32.totalorder %s157, 0
    %s160 = sadd.s32 %s159, 1
    %s161 = scalar_select %p158, %s159, %s160
    %p164 = pneg %p158
    %p165 = scmp.eq.s32.totalorder %s13, 1
    %p166 = por %p164, %p165
    %p167 = scmp.ne.s32.totalorder %s159, %s162
    %p168 = scmp.eq.s32.totalorder %s13, 0
    %p169 = por %p167, %p168
    %p170 = scmp.ne.s32.totalorder %s159, %s162
    %p171 = scmp.eq.s32.totalorder %s18, 1
    %p172 = por %p170, %p171
    %p173 = scmp.ne.s32.totalorder %s162, %s163
    %p174 = scmp.eq.s32.totalorder %s18, 0
    %p175 = por %p173, %p174
    %p176 = scmp.ne.s32.totalorder %s162, %s163
    %p177 = scmp.eq.s32.totalorder %s19, 1
    %p178 = por %p176, %p177
    %p180 = scmp.ne.s32.totalorder %s163, %s179
    %p181 = scmp.eq.s32.totalorder %s19, 0
    %p182 = por %p180, %p181
    %p183 = scmp.le.s32.totalorder 1, %s13
    %p184 = scmp.lt.s32.totalorder %s13, 3
    %p185 = pnand %p183, %p184
    %p186 = pneg %p185
    // Predicated region
    $region9: #{graph_attention_layer.3} parent=5 // pred_check
      _
    $region10: #{graph_attention_layer.3} parent=5 // pred_check_branch
      %188 = sbr.rel (%p185) target = $region12
    $region11: #{graph_attention_layer.3} parent=5 // pred_region
      %s189 = ssub.s32 %s13, 1
      // Predicated region
      $region13: #{graph_attention_layer.3} parent=11 // pred_check
        %p190 = pneg %p60
      $region14: #{graph_attention_layer.3} parent=11 // pred_check_branch
        %192 = sbr.rel (%p190) target = $region16
      $region15: #{graph_attention_layer.3} parent=11 // pred_region
        _
      $region16: #{graph_attention_layer.3} parent=11 // pred_fallthru
        _
      // Predicated region
      $region17: #{graph_attention_layer.3} parent=11 // pred_check
        %p193 = pneg %p81
      $region18: #{graph_attention_layer.3} parent=11 // pred_check_branch
        %195 = sbr.rel (%p193) target = $region20
      $region19: #{graph_attention_layer.3} parent=11 // pred_region
        _
      $region20: #{graph_attention_layer.3} parent=11 // pred_fallthru
        _
      // Predicated region
      $region21: #{graph_attention_layer.3} parent=11 // pred_check
        %p196 = pneg %p102
      $region22: #{graph_attention_layer.3} parent=11 // pred_check_branch
        %198 = sbr.rel (%p196) target = $region24
      $region23: #{graph_attention_layer.3} parent=11 // pred_region
        _
      $region24: #{graph_attention_layer.3} parent=11 // pred_fallthru
        _
      // Predicated region
      $region25: #{graph_attention_layer.3} parent=11 // pred_check
        %p199 = pneg %p123
      $region26: #{graph_attention_layer.3} parent=11 // pred_check_branch
        %201 = sbr.rel (%p199) target = $region28
      $region27: #{graph_attention_layer.3} parent=11 // pred_region
        _
      $region28: #{graph_attention_layer.3} parent=11 // pred_fallthru
        _
    $region12: #{graph_attention_layer.3} parent=5 // pred_fallthru
      _
    %p202 = scmp.lt.s32.totalorder %s13, 2
    // Predicated region
    $region29: #{graph_attention_layer.3} parent=5 // pred_check
      %p203 = pneg %p202
    $region30: #{graph_attention_layer.3} parent=5 // pred_check_branch
      %205 = sbr.rel (%p203) target = $region32
    $region31: #{graph_attention_layer.3} parent=5 // pred_region
      // Predicated region
      $region33: #{graph_attention_layer.3} parent=31 // pred_check
        %p206 = pneg %p33
      $region34: #{graph_attention_layer.3} parent=31 // pred_check_branch
        %208 = sbr.rel (%p206) target = $region36
      $region35: #{graph_attention_layer.3} parent=31 // pred_region
        %s209 = smul.u32 4, %s13
        %p210 = scmp.lt.s32.totalorder %s209, 7
        %s211 = scalar_select %p210, %s209, 7
        %s212 = smul.addr %s211, 2
        %s213 = smul.addr %s212, 8
        %s214 = scalar_lea.vmem %s0, %s213
        %s215 = smul.u32 4, %s13
      $region36: #{graph_attention_layer.3} parent=31 // pred_fallthru
        _
    $region32: #{graph_attention_layer.3} parent=5 // pred_fallthru
      _
    %p216 = scmp.le.s32.totalorder 1, %s13
    %p217 = scmp.lt.s32.totalorder %s13, 3
    %p218 = pnand %p216, %p217
    %p219 = pneg %p218
    // Predicated region
    $region37: #{graph_attention_layer.3} parent=5 // pred_check
      _
    $region38: #{graph_attention_layer.3} parent=5 // pred_check_branch
      %221 = sbr.rel (%p218) target = $region40
    $region39: #{graph_attention_layer.3} parent=5 // pred_region
      %s222 = ssub.s32 %s13, 1
      %s223 = smul.u32 4, %s18
      %p224 = scmp.lt.s32.totalorder %s223, 7
      %s225 = scalar_select %p224, %s223, 7
      %s226 = smul.addr %s225, 2
      %s227 = smul.addr %s226, 8
      %s228 = scalar_lea.vmem %s0, %s227
      %p229 = pneg %p39
      %p230 = pneg %p36
      %p231 = pneg %p60
      %p232 = pneg %p57
      %p233 = pneg %p81
      %p234 = pneg %p78
      %p235 = pneg %p102
      %p236 = pneg %p99
      %p237 = pneg %p123
      %p238 = pneg %p120
      %p239 = pneg %p149
      %p240 = pneg %p146
      %s241 = smul.u32 16, %s18
      %p242 = scmp.lt.s32.totalorder %s241, 31
      %s243 = scalar_select %p242, %s241, 31
      %s244 = smul.addr %s243, 8
      %s245 = scalar_lea.vmem %s5, %s244
      %p246 = pneg %p175
      %p247 = pneg %p172
      %s248 = smul.u32 16, %s18
      %p249 = scmp.lt.s32.totalorder %s248, 31
      %s250 = scalar_select %p249, %s248, 31
      %s251 = smul.addr %s250, 2
      %s252 = smul.addr %s251, 8
      %s253 = scalar_lea.vmem %s6, %s252
      %s254 = smul.u32 4, %s18
      %p255 = scmp.lt.s32.totalorder %s254, 7
      %s256 = scalar_select %p255, %s254, 7
      %s257 = smul.addr %s256, 2
      %s258 = smul.addr %s257, 8
      %s259 = scalar_lea.vmem %s0, %s258
      %s260 = smul.u32 4, %s18
      %s261 = smul.u32 16, %s18
      %p262 = scmp.lt.s32.totalorder %s261, 31
      %s263 = scalar_select %p262, %s261, 31
      %s264 = smul.addr %s263, 8
      %s265 = scalar_lea.vmem %s5, %s264
      %s266 = smul.u32 16, %s18
      %s267 = smul.u32 16, %s18
      %p268 = scmp.lt.s32.totalorder %s267, 31
      %s269 = scalar_select %p268, %s267, 31
      %s270 = smul.addr %s269, 2
      %s271 = smul.addr %s270, 8
      %s272 = scalar_lea.vmem %s6, %s271
      %s273 = smul.u32 16, %s18
      %s275 = smul.u32 %s18, 128
      %s276 = sshra.s32 %s275, 3
      %s277 = sand.u32 %s275, 7
      %s278 = smul.addr %s276, 4
      %s279 = scalar_lea.vmem %s4, %s278
      %v280 = vld [vmem:[%s279] sm:$0xf]
      %v281 = vld [vmem:[%s279 + $0x4] sm:$0xf]
      %v282 = vld [vmem:[%s279 + $0x8] sm:$0xf]
      %v283 = vld [vmem:[%s279 + $0xc] sm:$0xf]
      %v284 = vld [vmem:[%s279 + $0x10] sm:$0xf]
      %v285 = vld [vmem:[%s279 + $0x14] sm:$0xf]
      %v286 = vld [vmem:[%s279 + $0x18] sm:$0xf]
      %v287 = vld [vmem:[%s279 + $0x1c] sm:$0xf]
      %v288 = vld [vmem:[%s279 + $0x20] sm:$0xf]
      %v289 = vld [vmem:[%s279 + $0x24] sm:$0xf]
      %v290 = vld [vmem:[%s279 + $0x28] sm:$0xf]
      %v291 = vld [vmem:[%s279 + $0x2c] sm:$0xf]
      %v292 = vld [vmem:[%s279 + $0x30] sm:$0xf]
      %v293 = vld [vmem:[%s279 + $0x34] sm:$0xf]
      %v294 = vld [vmem:[%s279 + $0x38] sm:$0xf]
      %v295 = vld [vmem:[%s279 + $0x3c] sm:$0xf]
      %v296 = vunpack.c.l.bf16 %v280
      %v297 = vunpack.c.l.bf16 %v281
      %v298 = vunpack.c.l.bf16 %v282
      %v299 = vunpack.c.l.bf16 %v283
      %v300 = vunpack.c.l.bf16 %v284
      %v301 = vunpack.c.l.bf16 %v285
      %v302 = vunpack.c.l.bf16 %v286
      %v303 = vunpack.c.l.bf16 %v287
      %v304 = vunpack.c.l.bf16 %v288
      %v305 = vunpack.c.l.bf16 %v289
      %v306 = vunpack.c.l.bf16 %v290
      %v307 = vunpack.c.l.bf16 %v291
      %v308 = vunpack.c.l.bf16 %v292
      %v309 = vunpack.c.l.bf16 %v293
      %v310 = vunpack.c.l.bf16 %v294
      %v311 = vunpack.c.l.bf16 %v295
      %v312 = vld [vmem:[%s1] sm:$0x1]
      %v314 = vlaneseq
      %v315 = vshrl.u32 %v314, 7
      %v316 = vsub.s32 0, %v315
      %v317 = vrot.slane %v312, %v316
      %v319 = vmul.f32 %v296, %v317
      %v320 = vmul.f32 %v297, %v317
      %v321 = vmul.f32 %v298, %v317
      %v322 = vmul.f32 %v299, %v317
      %v323 = vmul.f32 %v300, %v317
      %v324 = vmul.f32 %v301, %v317
      %v325 = vmul.f32 %v302, %v317
      %v326 = vmul.f32 %v303, %v317
      %v327 = vmul.f32 %v304, %v317
      %v328 = vmul.f32 %v305, %v317
      %v329 = vmul.f32 %v306, %v317
      %v330 = vmul.f32 %v307, %v317
      %v331 = vmul.f32 %v308, %v317
      %v332 = vmul.f32 %v309, %v317
      %v333 = vmul.f32 %v310, %v317
      %v334 = vmul.f32 %v311, %v317
      %335 = vadd.xlane.f32.xlu0 %v319
      %v336 = vpop.xlane.xlu0 %335
      %337 = vadd.xlane.f32.xlu0 %v320
      %v338 = vpop.xlane.xlu0 %337
      %339 = vadd.xlane.f32.xlu0 %v321
      %v340 = vpop.xlane.xlu0 %339
      %341 = vadd.xlane.f32.xlu0 %v322
      %v342 = vpop.xlane.xlu0 %341
      %343 = vadd.xlane.f32.xlu0 %v323
      %v344 = vpop.xlane.xlu0 %343
      %345 = vadd.xlane.f32.xlu0 %v324
      %v346 = vpop.xlane.xlu0 %345
      %347 = vadd.xlane.f32.xlu0 %v325
      %v348 = vpop.xlane.xlu0 %347
      %349 = vadd.xlane.f32.xlu0 %v326
      %v350 = vpop.xlane.xlu0 %349
      %351 = vadd.xlane.f32.xlu0 %v327
      %v352 = vpop.xlane.xlu0 %351
      %353 = vadd.xlane.f32.xlu0 %v328
      %v354 = vpop.xlane.xlu0 %353
      %355 = vadd.xlane.f32.xlu0 %v329
      %v356 = vpop.xlane.xlu0 %355
      %357 = vadd.xlane.f32.xlu0 %v330
      %v358 = vpop.xlane.xlu0 %357
      %359 = vadd.xlane.f32.xlu0 %v331
      %v360 = vpop.xlane.xlu0 %359
      %361 = vadd.xlane.f32.xlu0 %v332
      %v362 = vpop.xlane.xlu0 %361
      %363 = vadd.xlane.f32.xlu0 %v333
      %v364 = vpop.xlane.xlu0 %363
      %365 = vadd.xlane.f32.xlu0 %v334
      %v366 = vpop.xlane.xlu0 %365
      %v367 = vld [vmem:[%s2] sm:$0x3]
      %v369 = vlaneseq
      %v370 = vshrl.u32 %v369, 7
      %v371 = vsub.s32 0, %v370
      %v372 = vrot.slane %v367, %v371
      %v373 = vlaneseq
      %v374 = vshrl.u32 %v373, 7
      %v375 = vsub.s32 1, %v374
      %v376 = vrot.slane %v367, %v375
      %v379 = vadd.f32 %v336, %v372
      %v380 = vadd.f32 %v336, %v376
      %v381 = vadd.f32 %v338, %v372
      %v382 = vadd.f32 %v338, %v376
      %v383 = vadd.f32 %v340, %v372
      %v384 = vadd.f32 %v340, %v376
      %v385 = vadd.f32 %v342, %v372
      %v386 = vadd.f32 %v342, %v376
      %v387 = vadd.f32 %v344, %v372
      %v388 = vadd.f32 %v344, %v376
      %v389 = vadd.f32 %v346, %v372
      %v390 = vadd.f32 %v346, %v376
      %v391 = vadd.f32 %v348, %v372
      %v392 = vadd.f32 %v348, %v376
      %v393 = vadd.f32 %v350, %v372
      %v394 = vadd.f32 %v350, %v376
      %v395 = vadd.f32 %v352, %v372
      %v396 = vadd.f32 %v352, %v376
      %v397 = vadd.f32 %v354, %v372
      %v398 = vadd.f32 %v354, %v376
      %v399 = vadd.f32 %v356, %v372
      %v400 = vadd.f32 %v356, %v376
      %v401 = vadd.f32 %v358, %v372
      %v402 = vadd.f32 %v358, %v376
      %v403 = vadd.f32 %v360, %v372
      %v404 = vadd.f32 %v360, %v376
      %v405 = vadd.f32 %v362, %v372
      %v406 = vadd.f32 %v362, %v376
      %v407 = vadd.f32 %v364, %v372
      %v408 = vadd.f32 %v364, %v376
      %v409 = vadd.f32 %v366, %v372
      %v410 = vadd.f32 %v366, %v376
      %v411 = vmul.f32 %v379, 0.2
      %v412 = vmul.f32 %v380, 0.2
      %v413 = vmul.f32 %v381, 0.2
      %v414 = vmul.f32 %v382, 0.2
      %v415 = vmul.f32 %v383, 0.2
      %v416 = vmul.f32 %v384, 0.2
      %v417 = vmul.f32 %v385, 0.2
      %v418 = vmul.f32 %v386, 0.2
      %v419 = vmul.f32 %v387, 0.2
      %v420 = vmul.f32 %v388, 0.2
      %v421 = vmul.f32 %v389, 0.2
      %v422 = vmul.f32 %v390, 0.2
      %v423 = vmul.f32 %v391, 0.2
      %v424 = vmul.f32 %v392, 0.2
      %v425 = vmul.f32 %v393, 0.2
      %v426 = vmul.f32 %v394, 0.2
      %v427 = vmul.f32 %v395, 0.2
      %v428 = vmul.f32 %v396, 0.2
      %v429 = vmul.f32 %v397, 0.2
      %v430 = vmul.f32 %v398, 0.2
      %v431 = vmul.f32 %v399, 0.2
      %v432 = vmul.f32 %v400, 0.2
      %v433 = vmul.f32 %v401, 0.2
      %v434 = vmul.f32 %v402, 0.2
      %v435 = vmul.f32 %v403, 0.2
      %v436 = vmul.f32 %v404, 0.2
      %v437 = vmul.f32 %v405, 0.2
      %v438 = vmul.f32 %v406, 0.2
      %v439 = vmul.f32 %v407, 0.2
      %v440 = vmul.f32 %v408, 0.2
      %v441 = vmul.f32 %v409, 0.2
      %v442 = vmul.f32 %v410, 0.2
      %v443 = vmax.f32 %v379, %v411
      %v444 = vmax.f32 %v380, %v412
      %v445 = vmax.f32 %v381, %v413
      %v446 = vmax.f32 %v382, %v414
      %v447 = vmax.f32 %v383, %v415
      %v448 = vmax.f32 %v384, %v416
      %v449 = vmax.f32 %v385, %v417
      %v450 = vmax.f32 %v386, %v418
      %v451 = vmax.f32 %v387, %v419
      %v452 = vmax.f32 %v388, %v420
      %v453 = vmax.f32 %v389, %v421
      %v454 = vmax.f32 %v390, %v422
      %v455 = vmax.f32 %v391, %v423
      %v456 = vmax.f32 %v392, %v424
      %v457 = vmax.f32 %v393, %v425
      %v458 = vmax.f32 %v394, %v426
      %v459 = vmax.f32 %v395, %v427
      %v460 = vmax.f32 %v396, %v428
      %v461 = vmax.f32 %v397, %v429
      %v462 = vmax.f32 %v398, %v430
      %v463 = vmax.f32 %v399, %v431
      %v464 = vmax.f32 %v400, %v432
      %v465 = vmax.f32 %v401, %v433
      %v466 = vmax.f32 %v402, %v434
      %v467 = vmax.f32 %v403, %v435
      %v468 = vmax.f32 %v404, %v436
      %v469 = vmax.f32 %v405, %v437
      %v470 = vmax.f32 %v406, %v438
      %v471 = vmax.f32 %v407, %v439
      %v472 = vmax.f32 %v408, %v440
      %v473 = vmax.f32 %v409, %v441
      %v474 = vmax.f32 %v410, %v442
      %v475 = vld [vmem:[%s259] sm:$0xff]
      %v476 = vld [vmem:[%s259 + $0x8] sm:$0xff]
      %v477 = vld [vmem:[%s259 + $0x10] sm:$0xff]
      %v478 = vld [vmem:[%s259 + $0x18] sm:$0xff]
      %v479 = vld [vmem:[%s259 + $0x20] sm:$0xff]
      %v480 = vld [vmem:[%s259 + $0x28] sm:$0xff]
      %v481 = vld [vmem:[%s259 + $0x30] sm:$0xff]
      %v482 = vld [vmem:[%s259 + $0x38] sm:$0xff]
      %v483 = vunpack.c.0.s8 %v475
      %v484 = vunpack.c.0.s8 %v476
      %v485 = vunpack.c.1.s8 %v475
      %v486 = vunpack.c.1.s8 %v476
      %v487 = vunpack.c.2.s8 %v475
      %v488 = vunpack.c.2.s8 %v476
      %v489 = vunpack.c.3.s8 %v475
      %v490 = vunpack.c.3.s8 %v476
      %v491 = vunpack.c.0.s8 %v477
      %v492 = vunpack.c.0.s8 %v478
      %v493 = vunpack.c.1.s8 %v477
      %v494 = vunpack.c.1.s8 %v478
      %v495 = vunpack.c.2.s8 %v477
      %v496 = vunpack.c.2.s8 %v478
      %v497 = vunpack.c.3.s8 %v477
      %v498 = vunpack.c.3.s8 %v478
      %v499 = vunpack.c.0.s8 %v479
      %v500 = vunpack.c.0.s8 %v480
      %v501 = vunpack.c.1.s8 %v479
      %v502 = vunpack.c.1.s8 %v480
      %v503 = vunpack.c.2.s8 %v479
      %v504 = vunpack.c.2.s8 %v480
      %v505 = vunpack.c.3.s8 %v479
      %v506 = vunpack.c.3.s8 %v480
      %v507 = vunpack.c.0.s8 %v481
      %v508 = vunpack.c.0.s8 %v482
      %v509 = vunpack.c.1.s8 %v481
      %v510 = vunpack.c.1.s8 %v482
      %v511 = vunpack.c.2.s8 %v481
      %v512 = vunpack.c.2.s8 %v482
      %v513 = vunpack.c.3.s8 %v481
      %v514 = vunpack.c.3.s8 %v482
      %v515 = vcvt.s32.f32 %v483
      %v516 = vcvt.s32.f32 %v484
      %v517 = vcvt.s32.f32 %v485
      %v518 = vcvt.s32.f32 %v486
      %v519 = vcvt.s32.f32 %v487
      %v520 = vcvt.s32.f32 %v488
      %v521 = vcvt.s32.f32 %v489
      %v522 = vcvt.s32.f32 %v490
      %v523 = vcvt.s32.f32 %v491
      %v524 = vcvt.s32.f32 %v492
      %v525 = vcvt.s32.f32 %v493
      %v526 = vcvt.s32.f32 %v494
      %v527 = vcvt.s32.f32 %v495
      %v528 = vcvt.s32.f32 %v496
      %v529 = vcvt.s32.f32 %v497
      %v530 = vcvt.s32.f32 %v498
      %v531 = vcvt.s32.f32 %v499
      %v532 = vcvt.s32.f32 %v500
      %v533 = vcvt.s32.f32 %v501
      %v534 = vcvt.s32.f32 %v502
      %v535 = vcvt.s32.f32 %v503
      %v536 = vcvt.s32.f32 %v504
      %v537 = vcvt.s32.f32 %v505
      %v538 = vcvt.s32.f32 %v506
      %v539 = vcvt.s32.f32 %v507
      %v540 = vcvt.s32.f32 %v508
      %v541 = vcvt.s32.f32 %v509
      %v542 = vcvt.s32.f32 %v510
      %v543 = vcvt.s32.f32 %v511
      %v544 = vcvt.s32.f32 %v512
      %v545 = vcvt.s32.f32 %v513
      %v546 = vcvt.s32.f32 %v514
      %vm547 = vcmp.gt.f32.partialorder %v515, 0.0
      %vm548 = vcmp.gt.f32.partialorder %v516, 0.0
      %vm549 = vcmp.gt.f32.partialorder %v517, 0.0
      %vm550 = vcmp.gt.f32.partialorder %v518, 0.0
      %vm551 = vcmp.gt.f32.partialorder %v519, 0.0
      %vm552 = vcmp.gt.f32.partialorder %v520, 0.0
      %vm553 = vcmp.gt.f32.partialorder %v521, 0.0
      %vm554 = vcmp.gt.f32.partialorder %v522, 0.0
      %vm555 = vcmp.gt.f32.partialorder %v523, 0.0
      %vm556 = vcmp.gt.f32.partialorder %v524, 0.0
      %vm557 = vcmp.gt.f32.partialorder %v525, 0.0
      %vm558 = vcmp.gt.f32.partialorder %v526, 0.0
      %vm559 = vcmp.gt.f32.partialorder %v527, 0.0
      %vm560 = vcmp.gt.f32.partialorder %v528, 0.0
      %vm561 = vcmp.gt.f32.partialorder %v529, 0.0
      %vm562 = vcmp.gt.f32.partialorder %v530, 0.0
      %vm563 = vcmp.gt.f32.partialorder %v531, 0.0
      %vm564 = vcmp.gt.f32.partialorder %v532, 0.0
      %vm565 = vcmp.gt.f32.partialorder %v533, 0.0
      %vm566 = vcmp.gt.f32.partialorder %v534, 0.0
      %vm567 = vcmp.gt.f32.partialorder %v535, 0.0
      %vm568 = vcmp.gt.f32.partialorder %v536, 0.0
      %vm569 = vcmp.gt.f32.partialorder %v537, 0.0
      %vm570 = vcmp.gt.f32.partialorder %v538, 0.0
      %vm571 = vcmp.gt.f32.partialorder %v539, 0.0
      %vm572 = vcmp.gt.f32.partialorder %v540, 0.0
      %vm573 = vcmp.gt.f32.partialorder %v541, 0.0
      %vm574 = vcmp.gt.f32.partialorder %v542, 0.0
      %vm575 = vcmp.gt.f32.partialorder %v543, 0.0
      %vm576 = vcmp.gt.f32.partialorder %v544, 0.0
      %vm577 = vcmp.gt.f32.partialorder %v545, 0.0
      %vm578 = vcmp.gt.f32.partialorder %v546, 0.0
      %v579 = vld [vmem:[%s3] sm:$0x3]
      %v581 = vlaneseq
      %v582 = vshrl.u32 %v581, 7
      %v583 = vsub.s32 0, %v582
      %v584 = vrot.slane %v579, %v583
      %v585 = vlaneseq
      %v586 = vshrl.u32 %v585, 7
      %v587 = vsub.s32 1, %v586
      %v588 = vrot.slane %v579, %v587
      %v591 = vsel %vm547, %v443, %v584
      %v592 = vsel %vm548, %v444, %v588
      %v593 = vsel %vm549, %v445, %v584
      %v594 = vsel %vm550, %v446, %v588
      %v595 = vsel %vm551, %v447, %v584
      %v596 = vsel %vm552, %v448, %v588
      %v597 = vsel %vm553, %v449, %v584
      %v598 = vsel %vm554, %v450, %v588
      %v599 = vsel %vm555, %v451, %v584
      %v600 = vsel %vm556, %v452, %v588
      %v601 = vsel %vm557, %v453, %v584
      %v602 = vsel %vm558, %v454, %v588
      %v603 = vsel %vm559, %v455, %v584
      %v604 = vsel %vm560, %v456, %v588
      %v605 = vsel %vm561, %v457, %v584
      %v606 = vsel %vm562, %v458, %v588
      %v607 = vsel %vm563, %v459, %v584
      %v608 = vsel %vm564, %v460, %v588
      %v609 = vsel %vm565, %v461, %v584
      %v610 = vsel %vm566, %v462, %v588
      %v611 = vsel %vm567, %v463, %v584
      %v612 = vsel %vm568, %v464, %v588
      %v613 = vsel %vm569, %v465, %v584
      %v614 = vsel %vm570, %v466, %v588
      %v615 = vsel %vm571, %v467, %v584
      %v616 = vsel %vm572, %v468, %v588
      %v617 = vsel %vm573, %v469, %v584
      %v618 = vsel %vm574, %v470, %v588
      %v619 = vsel %vm575, %v471, %v584
      %v620 = vsel %vm576, %v472, %v588
      %v621 = vsel %vm577, %v473, %v584
      %v622 = vsel %vm578, %v474, %v588
      %v623 = vmax.f32 %v591, %v592
      %624 = vmax.xlane.f32.xlu0 %v623
      %v625 = vpop.xlane.xlu0 %624
      %v626 = vmax.f32 %v593, %v594
      %627 = vmax.xlane.f32.xlu0 %v626
      %v628 = vpop.xlane.xlu0 %627
      %v629 = vmax.f32 %v595, %v596
      %630 = vmax.xlane.f32.xlu0 %v629
      %v631 = vpop.xlane.xlu0 %630
      %v632 = vmax.f32 %v597, %v598
      %633 = vmax.xlane.f32.xlu0 %v632
      %v634 = vpop.xlane.xlu0 %633
      %v635 = vmax.f32 %v599, %v600
      %636 = vmax.xlane.f32.xlu0 %v635
      %v637 = vpop.xlane.xlu0 %636
      %v638 = vmax.f32 %v601, %v602
      %639 = vmax.xlane.f32.xlu0 %v638
      %v640 = vpop.xlane.xlu0 %639
      %v641 = vmax.f32 %v603, %v604
      %642 = vmax.xlane.f32.xlu0 %v641
      %v643 = vpop.xlane.xlu0 %642
      %v644 = vmax.f32 %v605, %v606
      %645 = vmax.xlane.f32.xlu0 %v644
      %v646 = vpop.xlane.xlu0 %645
      %v647 = vmax.f32 %v607, %v608
      %648 = vmax.xlane.f32.xlu0 %v647
      %v649 = vpop.xlane.xlu0 %648
      %v650 = vmax.f32 %v609, %v610
      %651 = vmax.xlane.f32.xlu0 %v650
      %v652 = vpop.xlane.xlu0 %651
      %v653 = vmax.f32 %v611, %v612
      %654 = vmax.xlane.f32.xlu0 %v653
      %v655 = vpop.xlane.xlu0 %654
      %v656 = vmax.f32 %v613, %v614
      %657 = vmax.xlane.f32.xlu0 %v656
      %v658 = vpop.xlane.xlu0 %657
      %v659 = vmax.f32 %v615, %v616
      %660 = vmax.xlane.f32.xlu0 %v659
      %v661 = vpop.xlane.xlu0 %660
      %v662 = vmax.f32 %v617, %v618
      %663 = vmax.xlane.f32.xlu0 %v662
      %v664 = vpop.xlane.xlu0 %663
      %v665 = vmax.f32 %v619, %v620
      %666 = vmax.xlane.f32.xlu0 %v665
      %v667 = vpop.xlane.xlu0 %666
      %v668 = vmax.f32 %v621, %v622
      %669 = vmax.xlane.f32.xlu0 %v668
      %v670 = vpop.xlane.xlu0 %669
      %v671 = vsub.f32 %v591, %v625
      %v672 = vsub.f32 %v592, %v625
      %v673 = vsub.f32 %v593, %v628
      %v674 = vsub.f32 %v594, %v628
      %v675 = vsub.f32 %v595, %v631
      %v676 = vsub.f32 %v596, %v631
      %v677 = vsub.f32 %v597, %v634
      %v678 = vsub.f32 %v598, %v634
      %v679 = vsub.f32 %v599, %v637
      %v680 = vsub.f32 %v600, %v637
      %v681 = vsub.f32 %v601, %v640
      %v682 = vsub.f32 %v602, %v640
      %v683 = vsub.f32 %v603, %v643
      %v684 = vsub.f32 %v604, %v643
      %v685 = vsub.f32 %v605, %v646
      %v686 = vsub.f32 %v606, %v646
      %v687 = vsub.f32 %v607, %v649
      %v688 = vsub.f32 %v608, %v649
      %v689 = vsub.f32 %v609, %v652
      %v690 = vsub.f32 %v610, %v652
      %v691 = vsub.f32 %v611, %v655
      %v692 = vsub.f32 %v612, %v655
      %v693 = vsub.f32 %v613, %v658
      %v694 = vsub.f32 %v614, %v658
      %v695 = vsub.f32 %v615, %v661
      %v696 = vsub.f32 %v616, %v661
      %v697 = vsub.f32 %v617, %v664
      %v698 = vsub.f32 %v618, %v664
      %v699 = vsub.f32 %v619, %v667
      %v700 = vsub.f32 %v620, %v667
      %v701 = vsub.f32 %v621, %v670
      %v702 = vsub.f32 %v622, %v670
      %v703 = vmul.f32 %v671, 1.442695
      %v704 = vpow.pop %v703
      %v705 = vmul.f32 %v672, 1.442695
      %v706 = vpow.pop %v705
      %v707 = vmul.f32 %v673, 1.442695
      %v708 = vpow.pop %v707
      %v709 = vmul.f32 %v674, 1.442695
      %v710 = vpow.pop %v709
      %v711 = vmul.f32 %v675, 1.442695
      %v712 = vpow.pop %v711
      %v713 = vmul.f32 %v676, 1.442695
      %v714 = vpow.pop %v713
      %v715 = vmul.f32 %v677, 1.442695
      %v716 = vpow.pop %v715
      %v717 = vmul.f32 %v678, 1.442695
      %v718 = vpow.pop %v717
      %v719 = vmul.f32 %v679, 1.442695
      %v720 = vpow.pop %v719
      %v721 = vmul.f32 %v680, 1.442695
      %v722 = vpow.pop %v721
      %v723 = vmul.f32 %v681, 1.442695
      %v724 = vpow.pop %v723
      %v725 = vmul.f32 %v682, 1.442695
      %v726 = vpow.pop %v725
      %v727 = vmul.f32 %v683, 1.442695
      %v728 = vpow.pop %v727
      %v729 = vmul.f32 %v684, 1.442695
      %v730 = vpow.pop %v729
      %v731 = vmul.f32 %v685, 1.442695
      %v732 = vpow.pop %v731
      %v733 = vmul.f32 %v686, 1.442695
      %v734 = vpow.pop %v733
      %v735 = vmul.f32 %v687, 1.442695
      %v736 = vpow.pop %v735
      %v737 = vmul.f32 %v688, 1.442695
      %v738 = vpow.pop %v737
      %v739 = vmul.f32 %v689, 1.442695
      %v740 = vpow.pop %v739
      %v741 = vmul.f32 %v690, 1.442695
      %v742 = vpow.pop %v741
      %v743 = vmul.f32 %v691, 1.442695
      %v744 = vpow.pop %v743
      %v745 = vmul.f32 %v692, 1.442695
      %v746 = vpow.pop %v745
      %v747 = vmul.f32 %v693, 1.442695
      %v748 = vpow.pop %v747
      %v749 = vmul.f32 %v694, 1.442695
      %v750 = vpow.pop %v749
      %v751 = vmul.f32 %v695, 1.442695
      %v752 = vpow.pop %v751
      %v753 = vmul.f32 %v696, 1.442695
      %v754 = vpow.pop %v753
      %v755 = vmul.f32 %v697, 1.442695
      %v756 = vpow.pop %v755
      %v757 = vmul.f32 %v698, 1.442695
      %v758 = vpow.pop %v757
      %v759 = vmul.f32 %v699, 1.442695
      %v760 = vpow.pop %v759
      %v761 = vmul.f32 %v700, 1.442695
      %v762 = vpow.pop %v761
      %v763 = vmul.f32 %v701, 1.442695
      %v764 = vpow.pop %v763
      %v765 = vmul.f32 %v702, 1.442695
      %v766 = vpow.pop %v765
      %v767 = vadd.f32 %v704, %v706
      %768 = vadd.xlane.f32.xlu0 %v767
      %v769 = vpop.xlane.xlu0 %768
      %v770 = vadd.f32 %v708, %v710
      %771 = vadd.xlane.f32.xlu0 %v770
      %v772 = vpop.xlane.xlu0 %771
      %v773 = vadd.f32 %v712, %v714
      %774 = vadd.xlane.f32.xlu0 %v773
      %v775 = vpop.xlane.xlu0 %774
      %v776 = vadd.f32 %v716, %v718
      %777 = vadd.xlane.f32.xlu0 %v776
      %v778 = vpop.xlane.xlu0 %777
      %v779 = vadd.f32 %v720, %v722
      %780 = vadd.xlane.f32.xlu0 %v779
      %v781 = vpop.xlane.xlu0 %780
      %v782 = vadd.f32 %v724, %v726
      %783 = vadd.xlane.f32.xlu0 %v782
      %v784 = vpop.xlane.xlu0 %783
      %v785 = vadd.f32 %v728, %v730
      %786 = vadd.xlane.f32.xlu0 %v785
      %v787 = vpop.xlane.xlu0 %786
      %v788 = vadd.f32 %v732, %v734
      %789 = vadd.xlane.f32.xlu0 %v788
      %v790 = vpop.xlane.xlu0 %789
      %v791 = vadd.f32 %v736, %v738
      %792 = vadd.xlane.f32.xlu0 %v791
      %v793 = vpop.xlane.xlu0 %792
      %v794 = vadd.f32 %v740, %v742
      %795 = vadd.xlane.f32.xlu0 %v794
      %v796 = vpop.xlane.xlu0 %795
      %v797 = vadd.f32 %v744, %v746
      %798 = vadd.xlane.f32.xlu0 %v797
      %v799 = vpop.xlane.xlu0 %798
      %v800 = vadd.f32 %v748, %v750
      %801 = vadd.xlane.f32.xlu0 %v800
      %v802 = vpop.xlane.xlu0 %801
      %v803 = vadd.f32 %v752, %v754
      %804 = vadd.xlane.f32.xlu0 %v803
      %v805 = vpop.xlane.xlu0 %804
      %v806 = vadd.f32 %v756, %v758
      %807 = vadd.xlane.f32.xlu0 %v806
      %v808 = vpop.xlane.xlu0 %807
      %v809 = vadd.f32 %v760, %v762
      %810 = vadd.xlane.f32.xlu0 %v809
      %v811 = vpop.xlane.xlu0 %810
      %v812 = vadd.f32 %v764, %v766
      %813 = vadd.xlane.f32.xlu0 %v812
      %v814 = vpop.xlane.xlu0 %813
      %v815 = vrcp.pop %v769
      %v816 = vrcp.pop %v772
      %v817 = vrcp.pop %v775
      %v818 = vrcp.pop %v778
      %v819 = vrcp.pop %v781
      %v820 = vrcp.pop %v784
      %v821 = vrcp.pop %v787
      %v822 = vrcp.pop %v790
      %v823 = vrcp.pop %v793
      %v824 = vrcp.pop %v796
      %v825 = vrcp.pop %v799
      %v826 = vrcp.pop %v802
      %v827 = vrcp.pop %v805
      %v828 = vrcp.pop %v808
      %v829 = vrcp.pop %v811
      %v830 = vrcp.pop %v814
      %v831 = vmul.f32 %v704, %v815
      %v832 = vmul.f32 %v706, %v815
      %v833 = vmul.f32 %v708, %v816
      %v834 = vmul.f32 %v710, %v816
      %v835 = vmul.f32 %v712, %v817
      %v836 = vmul.f32 %v714, %v817
      %v837 = vmul.f32 %v716, %v818
      %v838 = vmul.f32 %v718, %v818
      %v839 = vmul.f32 %v720, %v819
      %v840 = vmul.f32 %v722, %v819
      %v841 = vmul.f32 %v724, %v820
      %v842 = vmul.f32 %v726, %v820
      %v843 = vmul.f32 %v728, %v821
      %v844 = vmul.f32 %v730, %v821
      %v845 = vmul.f32 %v732, %v822
      %v846 = vmul.f32 %v734, %v822
      %v847 = vmul.f32 %v736, %v823
      %v848 = vmul.f32 %v738, %v823
      %v849 = vmul.f32 %v740, %v824
      %v850 = vmul.f32 %v742, %v824
      %v851 = vmul.f32 %v744, %v825
      %v852 = vmul.f32 %v746, %v825
      %v853 = vmul.f32 %v748, %v826
      %v854 = vmul.f32 %v750, %v826
      %v855 = vmul.f32 %v752, %v827
      %v856 = vmul.f32 %v754, %v827
      %v857 = vmul.f32 %v756, %v828
      %v858 = vmul.f32 %v758, %v828
      %v859 = vmul.f32 %v760, %v829
      %v860 = vmul.f32 %v762, %v829
      %v861 = vmul.f32 %v764, %v830
      %v862 = vmul.f32 %v766, %v830
      %v863 = vpack.c.bf16 %v833, %v831
      %v864 = vpack.c.bf16 %v834, %v832
      %v865 = vpack.c.bf16 %v837, %v835
      %v866 = vpack.c.bf16 %v838, %v836
      %v867 = vpack.c.bf16 %v841, %v839
      %v868 = vpack.c.bf16 %v842, %v840
      %v869 = vpack.c.bf16 %v845, %v843
      %v870 = vpack.c.bf16 %v846, %v844
      %v871 = vpack.c.bf16 %v849, %v847
      %v872 = vpack.c.bf16 %v850, %v848
      %v873 = vpack.c.bf16 %v853, %v851
      %v874 = vpack.c.bf16 %v854, %v852
      %v875 = vpack.c.bf16 %v857, %v855
      %v876 = vpack.c.bf16 %v858, %v856
      %v877 = vpack.c.bf16 %v861, %v859
      %v878 = vpack.c.bf16 %v862, %v860
      %v879 = vld [vmem:[%s4] sm:$0xf]
      %v880 = vld [vmem:[%s4 + $0x4] sm:$0xf]
      %v881 = vld [vmem:[%s4 + $0x8] sm:$0xf]
      %v882 = vld [vmem:[%s4 + $0xc] sm:$0xf]
      %v883 = vld [vmem:[%s4 + $0x10] sm:$0xf]
      %v884 = vld [vmem:[%s4 + $0x14] sm:$0xf]
      %v885 = vld [vmem:[%s4 + $0x18] sm:$0xf]
      %v886 = vld [vmem:[%s4 + $0x1c] sm:$0xf]
      %v887 = vld [vmem:[%s4 + $0x20] sm:$0xf]
      %v888 = vld [vmem:[%s4 + $0x24] sm:$0xf]
      %v889 = vld [vmem:[%s4 + $0x28] sm:$0xf]
      %v890 = vld [vmem:[%s4 + $0x2c] sm:$0xf]
      %v891 = vld [vmem:[%s4 + $0x30] sm:$0xf]
      %v892 = vld [vmem:[%s4 + $0x34] sm:$0xf]
      %v893 = vld [vmem:[%s4 + $0x38] sm:$0xf]
      %v894 = vld [vmem:[%s4 + $0x3c] sm:$0xf]
      %v895 = vld [vmem:[%s4 + $0x40] sm:$0xf]
      %v896 = vld [vmem:[%s4 + $0x44] sm:$0xf]
      %v897 = vld [vmem:[%s4 + $0x48] sm:$0xf]
      %v898 = vld [vmem:[%s4 + $0x4c] sm:$0xf]
      %v899 = vld [vmem:[%s4 + $0x50] sm:$0xf]
      %v900 = vld [vmem:[%s4 + $0x54] sm:$0xf]
      %v901 = vld [vmem:[%s4 + $0x58] sm:$0xf]
      %v902 = vld [vmem:[%s4 + $0x5c] sm:$0xf]
      %v903 = vld [vmem:[%s4 + $0x60] sm:$0xf]
      %v904 = vld [vmem:[%s4 + $0x64] sm:$0xf]
      %v905 = vld [vmem:[%s4 + $0x68] sm:$0xf]
      %v906 = vld [vmem:[%s4 + $0x6c] sm:$0xf]
      %v907 = vld [vmem:[%s4 + $0x70] sm:$0xf]
      %v908 = vld [vmem:[%s4 + $0x74] sm:$0xf]
      %v909 = vld [vmem:[%s4 + $0x78] sm:$0xf]
      %v910 = vld [vmem:[%s4 + $0x7c] sm:$0xf]
      %v943 = vunpack.c.l.b16 %v879
      %v944 = vunpack.c.l.b16 %v880
      %v945 = vunpack.c.l.b16 %v881
      %v946 = vunpack.c.l.b16 %v882
      %v947 = vunpack.c.l.b16 %v883
      %v948 = vunpack.c.l.b16 %v884
      %v949 = vunpack.c.l.b16 %v885
      %v950 = vunpack.c.l.b16 %v886
      %v951 = vunpack.c.l.b16 %v887
      %v952 = vunpack.c.l.b16 %v888
      %v953 = vunpack.c.l.b16 %v889
      %v954 = vunpack.c.l.b16 %v890
      %v955 = vunpack.c.l.b16 %v891
      %v956 = vunpack.c.l.b16 %v892
      %v957 = vunpack.c.l.b16 %v893
      %v958 = vunpack.c.l.b16 %v894
      %v959 = vunpack.c.l.b16 %v895
      %v960 = vunpack.c.l.b16 %v896
      %v961 = vunpack.c.l.b16 %v897
      %v962 = vunpack.c.l.b16 %v898
      %v963 = vunpack.c.l.b16 %v899
      %v964 = vunpack.c.l.b16 %v900
      %v965 = vunpack.c.l.b16 %v901
      %v966 = vunpack.c.l.b16 %v902
      %v967 = vunpack.c.l.b16 %v903
      %v968 = vunpack.c.l.b16 %v904
      %v969 = vunpack.c.l.b16 %v905
      %v970 = vunpack.c.l.b16 %v906
      %v971 = vunpack.c.l.b16 %v907
      %v972 = vunpack.c.l.b16 %v908
      %v973 = vunpack.c.l.b16 %v909
      %v974 = vunpack.c.l.b16 %v910
      %v975 = vpack.c.b16 %v944, %v943
      %v976 = vpack.c.b16 %v946, %v945
      %v977 = vpack.c.b16 %v948, %v947
      %v978 = vpack.c.b16 %v950, %v949
      %v979 = vpack.c.b16 %v952, %v951
      %v980 = vpack.c.b16 %v954, %v953
      %v981 = vpack.c.b16 %v956, %v955
      %v982 = vpack.c.b16 %v958, %v957
      %v983 = vpack.c.b16 %v960, %v959
      %v984 = vpack.c.b16 %v962, %v961
      %v985 = vpack.c.b16 %v964, %v963
      %v986 = vpack.c.b16 %v966, %v965
      %v987 = vpack.c.b16 %v968, %v967
      %v988 = vpack.c.b16 %v970, %v969
      %v989 = vpack.c.b16 %v972, %v971
      %v990 = vpack.c.b16 %v974, %v973
      %1007 = vmatprep.subr.bf16.mxu0 0
      %1008 = vmatpush1.bf16.msra.mxu0 %v975
      %1009 = vmatprep.subr.bf16.mxu0 0
      %1010 = vmatpush1.bf16.msra.mxu0 %v976
      %1011 = vmatprep.subr.bf16.mxu0 0
      %1012 = vmatpush1.bf16.msra.mxu0 %v977
      %1013 = vmatprep.subr.bf16.mxu0 0
      %1014 = vmatpush1.bf16.msra.mxu0 %v978
      %1015 = vmatprep.subr.bf16.mxu0 0
      %1016 = vmatpush1.bf16.msra.mxu0 %v979
      %1017 = vmatprep.subr.bf16.mxu0 0
      %1018 = vmatpush1.bf16.msra.mxu0 %v980
      %1019 = vmatprep.subr.bf16.mxu0 0
      %1020 = vmatpush1.bf16.msra.mxu0 %v981
      %1021 = vmatprep.subr.bf16.mxu0 0
      %1022 = vmatpush1.bf16.msra.mxu0 %v982
      %1023 = vmatprep.subr.bf16.mxu0 0
      %1024 = vmatpush1.bf16.msra.mxu0 %v983
      %1025 = vmatprep.subr.bf16.mxu0 0
      %1026 = vmatpush1.bf16.msra.mxu0 %v984
      %1027 = vmatprep.subr.bf16.mxu0 0
      %1028 = vmatpush1.bf16.msra.mxu0 %v985
      %1029 = vmatprep.subr.bf16.mxu0 0
      %1030 = vmatpush1.bf16.msra.mxu0 %v986
      %1031 = vmatprep.subr.bf16.mxu0 0
      %1032 = vmatpush1.bf16.msra.mxu0 %v987
      %1033 = vmatprep.subr.bf16.mxu0 0
      %1034 = vmatpush1.bf16.msra.mxu0 %v988
      %1035 = vmatprep.subr.bf16.mxu0 0
      %1036 = vmatpush1.bf16.msra.mxu0 %v989
      %1037 = vmatprep.subr.bf16.mxu0 0
      %1038 = vmatpush1.bf16.msra.mxu0 %v990
      %1039 = vmatprep.mubr.bf16.mxu0 %v864
      %1040 = vmatmul.mubr.bf16.gmra.mrb[0].mxu0 %v863
      %v1041 = vpop.f32.mrb[0].mxu0
      %v1042 = vadd.f32 0.0, %v1041
      %v1043 = vpop.f32.mrb[0].mxu0
      %v1044 = vpop.f32.mrb[0].mxu0
      %v1045 = vadd.f32 0.0, %v1044
      %v1046 = vpop.f32.mrb[0].mxu0
      %1047 = vmatprep.mubr.bf16.mxu0 %v866
      %1048 = vmatmul.mubr.bf16.gmra.mrb[0].mxu0 %v865
      %v1049 = vpop.f32.mrb[0].mxu0
      %v1050 = vadd.f32 0.0, %v1049
      %v1051 = vpop.f32.mrb[0].mxu0
      %v1052 = vpop.f32.mrb[0].mxu0
      %v1053 = vadd.f32 0.0, %v1052
      %v1054 = vpop.f32.mrb[0].mxu0
      %1055 = vmatprep.mubr.bf16.mxu0 %v868
      %1056 = vmatmul.mubr.bf16.gmra.mrb[0].mxu0 %v867
      %v1057 = vpop.f32.mrb[0].mxu0
      %v1058 = vadd.f32 0.0, %v1057
      %v1059 = vpop.f32.mrb[0].mxu0
      %v1060 = vpop.f32.mrb[0].mxu0
      %v1061 = vadd.f32 0.0, %v1060
      %v1062 = vpop.f32.mrb[0].mxu0
      %1063 = vmatprep.mubr.bf16.mxu0 %v870
      %1064 = vmatmul.mubr.bf16.gmra.mrb[0].mxu0 %v869
      %v1065 = vpop.f32.mrb[0].mxu0
      %v1066 = vadd.f32 0.0, %v1065
      %v1067 = vpop.f32.mrb[0].mxu0
      %v1068 = vpop.f32.mrb[0].mxu0
      %v1069 = vadd.f32 0.0, %v1068
      %v1070 = vpop.f32.mrb[0].mxu0
      %1071 = vmatprep.mubr.bf16.mxu0 %v872
      %1072 = vmatmul.mubr.bf16.gmra.mrb[0].mxu0 %v871
      %v1073 = vpop.f32.mrb[0].mxu0
      %v1074 = vadd.f32 0.0, %v1073
      %v1075 = vpop.f32.mrb[0].mxu0
      %v1076 = vpop.f32.mrb[0].mxu0
      %v1077 = vadd.f32 0.0, %v1076
      %v1078 = vpop.f32.mrb[0].mxu0
      %1079 = vmatprep.mubr.bf16.mxu0 %v874
      %1080 = vmatmul.mubr.bf16.gmra.mrb[0].mxu0 %v873
      %v1081 = vpop.f32.mrb[0].mxu0
      %v1082 = vadd.f32 0.0, %v1081
      %v1083 = vpop.f32.mrb[0].mxu0
      %v1084 = vpop.f32.mrb[0].mxu0
      %v1085 = vadd.f32 0.0, %v1084
      %v1086 = vpop.f32.mrb[0].mxu0
      %1087 = vmatprep.mubr.bf16.mxu0 %v876
      %1088 = vmatmul.mubr.bf16.gmra.mrb[0].mxu0 %v875
      %v1089 = vpop.f32.mrb[0].mxu0
      %v1090 = vadd.f32 0.0, %v1089
      %v1091 = vpop.f32.mrb[0].mxu0
      %v1092 = vpop.f32.mrb[0].mxu0
      %v1093 = vadd.f32 0.0, %v1092
      %v1094 = vpop.f32.mrb[0].mxu0
      %1095 = vmatprep.mubr.bf16.mxu0 %v878
      %1096 = vmatmul.mubr.bf16.gmra.mrb[0].mxu0 %v877
      %v1097 = vpop.f32.mrb[0].mxu0
      %v1098 = vadd.f32 0.0, %v1097
      %v1099 = vpop.f32.mrb[0].mxu0
      %v1100 = vpop.f32.mrb[0].mxu0
      %v1101 = vadd.f32 0.0, %v1100
      %v1102 = vpop.f32.mrb[0].mxu0
      %1103 = vdwg.mxu0
      %vm1104 = vcmp.gt.f32.partialorder %v1042, 0.0
      %vm1105 = vcmp.gt.f32.partialorder %v1045, 0.0
      %vm1106 = vcmp.gt.f32.partialorder %v1050, 0.0
      %vm1107 = vcmp.gt.f32.partialorder %v1053, 0.0
      %vm1108 = vcmp.gt.f32.partialorder %v1058, 0.0
      %vm1109 = vcmp.gt.f32.partialorder %v1061, 0.0
      %vm1110 = vcmp.gt.f32.partialorder %v1066, 0.0
      %vm1111 = vcmp.gt.f32.partialorder %v1069, 0.0
      %vm1112 = vcmp.gt.f32.partialorder %v1074, 0.0
      %vm1113 = vcmp.gt.f32.partialorder %v1077, 0.0
      %vm1114 = vcmp.gt.f32.partialorder %v1082, 0.0
      %vm1115 = vcmp.gt.f32.partialorder %v1085, 0.0
      %vm1116 = vcmp.gt.f32.partialorder %v1090, 0.0
      %vm1117 = vcmp.gt.f32.partialorder %v1093, 0.0
      %vm1118 = vcmp.gt.f32.partialorder %v1098, 0.0
      %vm1119 = vcmp.gt.f32.partialorder %v1101, 0.0
      %v1120 = vmin.f32 %v1042, 0.0
      %v1121 = vmin.f32 %v1045, 0.0
      %v1122 = vmin.f32 %v1050, 0.0
      %v1123 = vmin.f32 %v1053, 0.0
      %v1124 = vmin.f32 %v1058, 0.0
      %v1125 = vmin.f32 %v1061, 0.0
      %v1126 = vmin.f32 %v1066, 0.0
      %v1127 = vmin.f32 %v1069, 0.0
      %v1128 = vmin.f32 %v1074, 0.0
      %v1129 = vmin.f32 %v1077, 0.0
      %v1130 = vmin.f32 %v1082, 0.0
      %v1131 = vmin.f32 %v1085, 0.0
      %v1132 = vmin.f32 %v1090, 0.0
      %v1133 = vmin.f32 %v1093, 0.0
      %v1134 = vmin.f32 %v1098, 0.0
      %v1135 = vmin.f32 %v1101, 0.0
      %v1136 = vmul.f32 %v1120, 1.442695
      %v1137 = vpow.pop %v1136
      %v1138 = vmul.f32 %v1121, 1.442695
      %v1139 = vpow.pop %v1138
      %v1140 = vmul.f32 %v1122, 1.442695
      %v1141 = vpow.pop %v1140
      %v1142 = vmul.f32 %v1123, 1.442695
      %v1143 = vpow.pop %v1142
      %v1144 = vmul.f32 %v1124, 1.442695
      %v1145 = vpow.pop %v1144
      %v1146 = vmul.f32 %v1125, 1.442695
      %v1147 = vpow.pop %v1146
      %v1148 = vmul.f32 %v1126, 1.442695
      %v1149 = vpow.pop %v1148
      %v1150 = vmul.f32 %v1127, 1.442695
      %v1151 = vpow.pop %v1150
      %v1152 = vmul.f32 %v1128, 1.442695
      %v1153 = vpow.pop %v1152
      %v1154 = vmul.f32 %v1129, 1.442695
      %v1155 = vpow.pop %v1154
      %v1156 = vmul.f32 %v1130, 1.442695
      %v1157 = vpow.pop %v1156
      %v1158 = vmul.f32 %v1131, 1.442695
      %v1159 = vpow.pop %v1158
      %v1160 = vmul.f32 %v1132, 1.442695
      %v1161 = vpow.pop %v1160
      %v1162 = vmul.f32 %v1133, 1.442695
      %v1163 = vpow.pop %v1162
      %v1164 = vmul.f32 %v1134, 1.442695
      %v1165 = vpow.pop %v1164
      %v1166 = vmul.f32 %v1135, 1.442695
      %v1167 = vpow.pop %v1166
      %v1168 = vsub.f32 %v1137, 1.0
      %v1169 = vsub.f32 %v1139, 1.0
      %v1170 = vsub.f32 %v1141, 1.0
      %v1171 = vsub.f32 %v1143, 1.0
      %v1172 = vsub.f32 %v1145, 1.0
      %v1173 = vsub.f32 %v1147, 1.0
      %v1174 = vsub.f32 %v1149, 1.0
      %v1175 = vsub.f32 %v1151, 1.0
      %v1176 = vsub.f32 %v1153, 1.0
      %v1177 = vsub.f32 %v1155, 1.0
      %v1178 = vsub.f32 %v1157, 1.0
      %v1179 = vsub.f32 %v1159, 1.0
      %v1180 = vsub.f32 %v1161, 1.0
      %v1181 = vsub.f32 %v1163, 1.0
      %v1182 = vsub.f32 %v1165, 1.0
      %v1183 = vsub.f32 %v1167, 1.0
      %v1184 = vsel %vm1104, %v1042, %v1168
      %v1185 = vsel %vm1105, %v1045, %v1169
      %v1186 = vsel %vm1106, %v1050, %v1170
      %v1187 = vsel %vm1107, %v1053, %v1171
      %v1188 = vsel %vm1108, %v1058, %v1172
      %v1189 = vsel %vm1109, %v1061, %v1173
      %v1190 = vsel %vm1110, %v1066, %v1174
      %v1191 = vsel %vm1111, %v1069, %v1175
      %v1192 = vsel %vm1112, %v1074, %v1176
      %v1193 = vsel %vm1113, %v1077, %v1177
      %v1194 = vsel %vm1114, %v1082, %v1178
      %v1195 = vsel %vm1115, %v1085, %v1179
      %v1196 = vsel %vm1116, %v1090, %v1180
      %v1197 = vsel %vm1117, %v1093, %v1181
      %v1198 = vsel %vm1118, %v1098, %v1182
      %v1199 = vsel %vm1119, %v1101, %v1183
      %1200 = vst [vmem:[%s265] sm:$0xff] %v1184
      %1201 = vst [vmem:[%s265 + $0x8] sm:$0xff] %v1185
      %1202 = vst [vmem:[%s265 + $0x10] sm:$0xff] %v1186
      %1203 = vst [vmem:[%s265 + $0x18] sm:$0xff] %v1187
      %1204 = vst [vmem:[%s265 + $0x20] sm:$0xff] %v1188
      %1205 = vst [vmem:[%s265 + $0x28] sm:$0xff] %v1189
      %1206 = vst [vmem:[%s265 + $0x30] sm:$0xff] %v1190
      %1207 = vst [vmem:[%s265 + $0x38] sm:$0xff] %v1191
      %1208 = vst [vmem:[%s265 + $0x40] sm:$0xff] %v1192
      %1209 = vst [vmem:[%s265 + $0x48] sm:$0xff] %v1193
      %1210 = vst [vmem:[%s265 + $0x50] sm:$0xff] %v1194
      %1211 = vst [vmem:[%s265 + $0x58] sm:$0xff] %v1195
      %1212 = vst [vmem:[%s265 + $0x60] sm:$0xff] %v1196
      %1213 = vst [vmem:[%s265 + $0x68] sm:$0xff] %v1197
      %1214 = vst [vmem:[%s265 + $0x70] sm:$0xff] %v1198
      %1215 = vst [vmem:[%s265 + $0x78] sm:$0xff] %v1199
      %1216 = vst [vmem:[%s272] sm:$0xff] %v831
      %1217 = vst [vmem:[%s272 + $0x8] sm:$0xff] %v832
      %1218 = vst [vmem:[%s272 + $0x10] sm:$0xff] %v833
      %1219 = vst [vmem:[%s272 + $0x18] sm:$0xff] %v834
      %1220 = vst [vmem:[%s272 + $0x20] sm:$0xff] %v835
      %1221 = vst [vmem:[%s272 + $0x28] sm:$0xff] %v836
      %1222 = vst [vmem:[%s272 + $0x30] sm:$0xff] %v837
      %1223 = vst [vmem:[%s272 + $0x38] sm:$0xff] %v838
      %1224 = vst [vmem:[%s272 + $0x40] sm:$0xff] %v839
      %1225 = vst [vmem:[%s272 + $0x48] sm:$0xff] %v840
      %1226 = vst [vmem:[%s272 + $0x50] sm:$0xff] %v841
      %1227 = vst [vmem:[%s272 + $0x58] sm:$0xff] %v842
      %1228 = vst [vmem:[%s272 + $0x60] sm:$0xff] %v843
      %1229 = vst [vmem:[%s272 + $0x68] sm:$0xff] %v844
      %1230 = vst [vmem:[%s272 + $0x70] sm:$0xff] %v845
      %1231 = vst [vmem:[%s272 + $0x78] sm:$0xff] %v846
      %1232 = vst [vmem:[%s272 + $0x80] sm:$0xff] %v847
      %1233 = vst [vmem:[%s272 + $0x88] sm:$0xff] %v848
      %1234 = vst [vmem:[%s272 + $0x90] sm:$0xff] %v849
      %1235 = vst [vmem:[%s272 + $0x98] sm:$0xff] %v850
      %1236 = vst [vmem:[%s272 + $0xa0] sm:$0xff] %v851
      %1237 = vst [vmem:[%s272 + $0xa8] sm:$0xff] %v852
      %1238 = vst [vmem:[%s272 + $0xb0] sm:$0xff] %v853
      %1239 = vst [vmem:[%s272 + $0xb8] sm:$0xff] %v854
      %1240 = vst [vmem:[%s272 + $0xc0] sm:$0xff] %v855
      %1241 = vst [vmem:[%s272 + $0xc8] sm:$0xff] %v856
      %1242 = vst [vmem:[%s272 + $0xd0] sm:$0xff] %v857
      %1243 = vst [vmem:[%s272 + $0xd8] sm:$0xff] %v858
      %1244 = vst [vmem:[%s272 + $0xe0] sm:$0xff] %v859
      %1245 = vst [vmem:[%s272 + $0xe8] sm:$0xff] %v860
      %1246 = vst [vmem:[%s272 + $0xf0] sm:$0xff] %v861
      %1247 = vst [vmem:[%s272 + $0xf8] sm:$0xff] %v862
      %s1248 = smul.u32 16, %s18
      %p1249 = scmp.lt.s32.totalorder %s1248, 31
      %s1250 = scalar_select %p1249, %s1248, 31
      %s1251 = smul.addr %s1250, 8
      %s1252 = scalar_lea.vmem %s5, %s1251
      %s1253 = smul.u32 16, %s18
      %p1254 = scmp.lt.s32.totalorder %s1253, 31
      %s1255 = scalar_select %p1254, %s1253, 31
      %s1256 = smul.addr %s1255, 2
      %s1257 = smul.addr %s1256, 8
      %s1258 = scalar_lea.vmem %s6, %s1257
      // Predicated region
      $region41: #{graph_attention_layer.3} parent=39 // pred_check
        %p1259 = pneg %p146
      $region42: #{graph_attention_layer.3} parent=39 // pred_check_branch
        %1261 = sbr.rel (%p1259) target = $region44
      $region43: #{graph_attention_layer.3} parent=39 // pred_region
        %s1262 = smul.u32 16, %s18
      $region44: #{graph_attention_layer.3} parent=39 // pred_fallthru
        _
      // Predicated region
      $region45: #{graph_attention_layer.3} parent=39 // pred_check
        %p1263 = pneg %p172
      $region46: #{graph_attention_layer.3} parent=39 // pred_check_branch
        %1265 = sbr.rel (%p1263) target = $region48
      $region47: #{graph_attention_layer.3} parent=39 // pred_region
        %s1266 = smul.u32 16, %s18
      $region48: #{graph_attention_layer.3} parent=39 // pred_fallthru
        _
    $region40: #{graph_attention_layer.3} parent=5 // pred_fallthru
      _
    %p1267 = scmp.le.s32.totalorder 2, %s13
    // Predicated region
    $region49: #{graph_attention_layer.3} parent=5 // pred_check
      %p1268 = pneg %p1267
    $region50: #{graph_attention_layer.3} parent=5 // pred_check_branch
      %1270 = sbr.rel (%p1268) target = $region52
    $region51: #{graph_attention_layer.3} parent=5 // pred_region
      %s1271 = ssub.s32 %s13, 2
      // Predicated region
      $region53: #{graph_attention_layer.3} parent=51 // pred_check
        %p1272 = pneg %p152
      $region54: #{graph_attention_layer.3} parent=51 // pred_check_branch
        %1274 = sbr.rel (%p1272) target = $region56
      $region55: #{graph_attention_layer.3} parent=51 // pred_region
        %s1275 = smul.u32 16, %s19
        %p1276 = scmp.lt.s32.totalorder %s1275, 31
        %s1277 = scalar_select %p1276, %s1275, 31
        %s1278 = smul.addr %s1277, 8
        %s1279 = scalar_lea.vmem %s5, %s1278
      $region56: #{graph_attention_layer.3} parent=51 // pred_fallthru
        _
      // Predicated region
      $region57: #{graph_attention_layer.3} parent=51 // pred_check
        %p1280 = pneg %p178
      $region58: #{graph_attention_layer.3} parent=51 // pred_check_branch
        %1282 = sbr.rel (%p1280) target = $region60
      $region59: #{graph_attention_layer.3} parent=51 // pred_region
        %s1283 = smul.u32 16, %s19
        %p1284 = scmp.lt.s32.totalorder %s1283, 31
        %s1285 = scalar_select %p1284, %s1283, 31
        %s1286 = smul.addr %s1285, 2
        %s1287 = smul.addr %s1286, 8
        %s1288 = scalar_lea.vmem %s6, %s1287
      $region60: #{graph_attention_layer.3} parent=51 // pred_fallthru
        _
    $region52: #{graph_attention_layer.3} parent=5 // pred_fallthru
      _
  $region6: #{graph_attention_layer.3} parent=0 // loop_footer
    %s17 = sadd.s32 1, %s13
  $region7: #{graph_attention_layer.3} parent=0 // loop_footer_branch
    %12 = sbr.rel target = $region3
  $region8: #{graph_attention_layer.3} parent=0 // loop_exit
    _

</llo_original>
